<compile_context>
chip_gen: v6e
topology: v6e:2x2x1
jax: 0.10.0
libtpu: 0.0.40
codegen_flags: <defaults>
</compile_context>

<pallas_src>
import functools
import math

import jax
import jax.numpy as jnp
from jax.experimental import pallas as pl
from jax.experimental.pallas import tpu as pltpu


# ----------------------------------------------------------------------------
# Generation-aware tiling / VMEM configuration
# ----------------------------------------------------------------------------
@functools.lru_cache(maxsize=None)
def _matmul_config():
    """(tm_target, tn_target, tk_target, vmem_limit_bytes) per TPU generation."""
    vmem_bytes = 64 * 1024 * 1024                 # conservative (v7x per-TC)
    try:
        info = pltpu.get_tpu_info()
        vmem_bytes = int(getattr(info, "vmem_capacity_bytes", vmem_bytes))
    except Exception:
        pass
    if vmem_bytes >= 100 * 1024 * 1024:           # v5e / v6e: 128 MiB VMEM
        return 256, 256, 1024, 96 * 1024 * 1024
    return 256, 256, 512, 40 * 1024 * 1024        # v7x: 64 MiB VMEM per TC


def _pick_tile(dim, target, align):
    """Largest divisor of `dim` that is <= target and a multiple of `align`,
    otherwise the full dimension (a full-extent block is always layout-legal)."""
    if dim <= target:
        return dim
    d = (target // align) * align
    while d >= align:
        if dim % d == 0:
            return d
        d -= align
    return dim


# ----------------------------------------------------------------------------
# Fused linear kernel: tiled matmul + bias + (activation | residual+LayerNorm)
# ----------------------------------------------------------------------------
def _linear_kernel(x_ref, w_ref, b_ref, *rest, activation, fuse_ln, eps):
    if fuse_ln:
        res_ref, g_ref, beta_ref, o_ref, acc_ref = rest
    else:
        o_ref, acc_ref = rest

    @pl.when(pl.program_id(2) == 0)
    def _():
        acc_ref[...] = jnp.zeros_like(acc_ref)

    acc_ref[...] += jnp.dot(x_ref[...], w_ref[...],
                            preferred_element_type=jnp.float32)

    @pl.when(pl.program_id(2) == pl.num_programs(2) - 1)
    def _():
        y = acc_ref[...] + b_ref[...]                       # f32 epilogue
        if activation == "gelu":
            # Exact (erf-based) GELU, matching HF BertModel's default.
            y = 0.5 * y * (1.0 + jax.lax.erf(y * 0.7071067811865476))
        if fuse_ln:
            y = y + res_ref[...].astype(jnp.float32)
            mean = jnp.mean(y, axis=-1, keepdims=True)
            var = jnp.mean((y - mean) * (y - mean), axis=-1, keepdims=True)
            y = (y - mean) * jax.lax.rsqrt(var + eps)
            y = y * g_ref[...] + beta_ref[...]
        o_ref[...] = y.astype(o_ref.dtype)


def fused_linear(x, w, b, *, activation="none", residual=None,
                 gamma=None, beta=None, eps=1e-12, out_dtype=jnp.bfloat16):
    """y = act(x @ w + b)  or  LayerNorm(x @ w + b + residual) * gamma + beta.

    x, w (and residual) must already be bf16; b/gamma/beta are (1, N) f32."""
    M, K = x.shape
    _, N = w.shape
    fuse_ln = residual is not None

    tm_t, tn_t, tk_t, vmem_limit = _matmul_config()
    tm = _pick_tile(M, tm_t, 8)
    tk = _pick_tile(K, tk_t, 128)
    # LayerNorm needs the full output row resident -> full-N tile when fused.
    tn = N if fuse_ln else _pick_tile(N, tn_t, 128)
    if fuse_ln:
        assert tn == N, "LayerNorm epilogue requires the full row in one tile"
    grid = (M // tm, N // tn, K // tk)

    in_specs = [
        pl.BlockSpec((tm, tk), lambda i, j, k: (i, k)),
        pl.BlockSpec((tk, tn), lambda i, j, k: (k, j)),
        pl.BlockSpec((1, tn), lambda i, j, k: (0, j)),
    ]
    args = [x, w, b]
    if fuse_ln:
        in_specs += [
            pl.BlockSpec((tm, tn), lambda i, j, k: (i, j)),
            pl.BlockSpec((1, tn), lambda i, j, k: (0, j)),
            pl.BlockSpec((1, tn), lambda i, j, k: (0, j)),
        ]
        args += [residual, gamma, beta]

    return pl.pallas_call(
        functools.partial(_linear_kernel, activation=activation,
                          fuse_ln=fuse_ln, eps=eps),
        out_shape=jax.ShapeDtypeStruct((M, N), out_dtype),
        grid_spec=pltpu.PrefetchScalarGridSpec(
            num_scalar_prefetch=0,
            grid=grid,
            in_specs=in_specs,
            out_specs=pl.BlockSpec((tm, tn), lambda i, j, k: (i, j)),
            scratch_shapes=[pltpu.VMEM((tm, tn), jnp.float32)],
        ),
        compiler_params=pltpu.CompilerParams(
            dimension_semantics=("parallel", "parallel", "arbitrary"),
            vmem_limit_bytes=vmem_limit,
        ),
    )(*args)


# ----------------------------------------------------------------------------
# Multi-head self-attention on packed QKV.
#   grid = (batch, query-block); heads processed in 128-lane groups in-kernel.
# ----------------------------------------------------------------------------
def _attention_kernel(qkv_ref, mask_ref, o_ref, *,
                      num_heads, head_dim, heads_per_group, tq):
    H = num_heads * head_dim
    qi = pl.program_id(1)
    q_start = pl.multiple_of(qi * tq, tq)
    mask = mask_ref[0]                               # (1, S) additive mask, f32

    gw = heads_per_group * head_dim                  # lane-dense group width
    for g in range(num_heads // heads_per_group):    # static loop, stays on-chip
        g_lo = g * gw
        qg = qkv_ref[0, pl.ds(q_start, tq), g_lo:g_lo + gw]          # (tq, gw)
        kg = qkv_ref[0, :, H + g_lo:H + g_lo + gw]                   # (S, gw)
        vg = qkv_ref[0, :, 2 * H + g_lo:2 * H + g_lo + gw]           # (S, gw)
        ctx_heads = []
        for hh in range(heads_per_group):
            lo = hh * head_dim
            qh = qg[:, lo:lo + head_dim]
            kh = kg[:, lo:lo + head_dim]
            vh = vg[:, lo:lo + head_dim]
            # 1/sqrt(dh) is pre-folded into the query projection weights/bias.
            scores = jax.lax.dot_general(
                qh, kh, (((1,), (1,)), ((), ())),
                preferred_element_type=jnp.float32) + mask           # (tq, S)
            m = jnp.max(scores, axis=-1, keepdims=True)
            # bf16 exp (EUP-bound region); p feeds the bf16 PV matmul directly.
            p = jnp.exp((scores - m).astype(jnp.bfloat16))
            l = jnp.sum(p, axis=-1, keepdims=True, dtype=jnp.float32)
            ctx = jnp.dot(p, vh, preferred_element_type=jnp.float32)
            # Deferred softmax normalization: (tq, dh) multiplies, not (tq, S).
            ctx_heads.append(ctx * pl.reciprocal(l, approx=True))
        # Lane-dense per-group store; live state capped at one head group.
        o_ref[0, :, g_lo:g_lo + gw] = (
            jnp.concatenate(ctx_heads, axis=-1).astype(o_ref.dtype))


def attention(qkv, mask, *, num_heads):
    """qkv: (B, S, 3H) packed bf16; mask: (B, 1, S) additive f32."""
    B, S, H3 = qkv.shape
    H = H3 // 3
    dh = H // num_heads
    if dh >= 128:
        hpg = 1
    else:
        hpg = math.gcd(max(1, 128 // dh), num_heads)   # e.g. 2 for BERT-base
    tq = _pick_tile(S, 256, 8)
    _, _, _, vmem_limit = _matmul_config()

    return pl.pallas_call(
        functools.partial(_attention_kernel, num_heads=num_heads,
                          head_dim=dh, heads_per_group=hpg, tq=tq),
        out_shape=jax.ShapeDtypeStruct((B, S, H), jnp.bfloat16),
        grid=(B, S // tq),
        in_specs=[pl.BlockSpec((1, S, H3), lambda b, qi: (b, 0, 0)),
                  pl.BlockSpec((1, 1, S), lambda b, qi: (b, 0, 0))],
        out_specs=pl.BlockSpec((1, tq, H), lambda b, qi: (b, qi, 0)),
        compiler_params=pltpu.CompilerParams(
            dimension_semantics=("parallel", "parallel"),
            vmem_limit_bytes=vmem_limit,
        ),
    )(qkv, mask)


# ----------------------------------------------------------------------------
# Pooler + FinalFC + sigmoid, fused into one tiny kernel
# ----------------------------------------------------------------------------
def _pooler_head_kernel(x_ref, pw_ref, pb_ref, fw_ref, fb_ref, o_ref):
    pooled = jnp.tanh(jnp.dot(x_ref[...], pw_ref[...],
                              preferred_element_type=jnp.float32) + pb_ref[...])
    logits = jnp.dot(pooled.astype(fw_ref.dtype), fw_ref[...],
                     preferred_element_type=jnp.float32) + fb_ref[...]
    o_ref[...] = 1.0 / (1.0 + jnp.exp(-logits))


def pooler_head(first_token, pool_w, pool_b, fc_w, fc_b):
    B, _ = first_token.shape
    vmem = pl.BlockSpec(memory_space=pltpu.MemorySpace.VMEM)
    probs = pl.pallas_call(
        _pooler_head_kernel,
        out_shape=jax.ShapeDtypeStruct((B, 1), jnp.float32),
        in_specs=[vmem] * 5,
        out_specs=vmem,
    )(first_token, pool_w, pool_b, fc_w, fc_b)
    return probs.squeeze(-1)


# ----------------------------------------------------------------------------
# Parameter setup: raw f32 (PyTorch-equivalent) -> one-time bf16 prepare step
# ----------------------------------------------------------------------------
def init_params(key, *, num_layers, hidden, intermediate):
    def dense(k, fan_in, fan_out):
        kw, kb = jax.random.split(k)
        w = 0.02 * jax.random.normal(kw, (fan_in, fan_out), jnp.float32)
        b = 0.02 * jax.random.normal(kb, (fan_out,), jnp.float32)
        return w, b

    keys = jax.random.split(key, num_layers + 2)
    layers = []
    for li in range(num_layers):
        lk = jax.random.split(keys[li], 6)
        q_w, q_b = dense(lk[0], hidden, hidden)
        k_w, k_b = dense(lk[1], hidden, hidden)
        v_w, v_b = dense(lk[2], hidden, hidden)
        ao_w, ao_b = dense(lk[3], hidden, hidden)
        i_w, i_b = dense(lk[4], hidden, intermediate)
        o_w, o_b = dense(lk[5], intermediate, hidden)
        layers.append(dict(
            # Q/K/V projections fused into one (H, 3H) weight / (3H,) bias.
            qkv_w=jnp.concatenate([q_w, k_w, v_w], axis=1),
            qkv_b=jnp.concatenate([q_b, k_b, v_b], axis=0),
            ao_w=ao_w, ao_b=ao_b,
            aln_g=jnp.ones((hidden,), jnp.float32),
            aln_b=jnp.zeros((hidden,), jnp.float32),
            i_w=i_w, i_b=i_b, o_w=o_w, o_b=o_b,
            oln_g=jnp.ones((hidden,), jnp.float32),
            oln_b=jnp.zeros((hidden,), jnp.float32),
        ))
    pool_w, pool_b = dense(keys[num_layers], hidden, hidden)
    fc_w, fc_b = dense(keys[num_layers + 1], hidden, 1)
    return dict(layers=layers, pool_w=pool_w, pool_b=pool_b,
                fc_w=fc_w, fc_b=fc_b)


def prepare_params(raw, *, num_heads):
    """One-time: cast matmul weights to bf16, fold 1/sqrt(dh) into the query
    projection, store biases / LN params as (1, N) f32 rows."""
    H = raw["pool_w"].shape[0]
    dh = H // num_heads
    q_scale = 1.0 / math.sqrt(dh)
    col_scale = jnp.concatenate(
        [jnp.full((H,), q_scale, jnp.float32), jnp.ones((2 * H,), jnp.float32)])

    def row(v):
        return v.reshape(1, -1).astype(jnp.float32)

    layers = []
    for lyr in raw["layers"]:
        layers.append(dict(
            qkv_w=(lyr["qkv_w"] * col_scale).astype(jnp.bfloat16),
            qkv_b=row(lyr["qkv_b"] * col_scale),
            ao_w=lyr["ao_w"].astype(jnp.bfloat16), ao_b=row(lyr["ao_b"]),
            aln_g=row(lyr["aln_g"]), aln_b=row(lyr["aln_b"]),
            i_w=lyr["i_w"].astype(jnp.bfloat16), i_b=row(lyr["i_b"]),
            o_w=lyr["o_w"].astype(jnp.bfloat16), o_b=row(lyr["o_b"]),
            oln_g=row(lyr["oln_g"]), oln_b=row(lyr["oln_b"]),
        ))
    return dict(layers=layers,
                pool_w=raw["pool_w"].astype(jnp.bfloat16),
                pool_b=row(raw["pool_b"]),
                fc_w=raw["fc_w"].astype(jnp.bfloat16),
                fc_b=row(raw["fc_b"]))


# ----------------------------------------------------------------------------
# Forward pass (jitted: all inter-kernel glue fuses, one dispatch per forward)
# ----------------------------------------------------------------------------
@functools.partial(jax.jit, static_argnames=("num_heads",))
def bert_wrapper_forward(params, embeddings, *, num_heads, attention_mask=None):
    B, S, H = embeddings.shape

    if attention_mask is None:
        attention_mask = jnp.ones((B, S), jnp.float32)
    # Extended additive mask, shape (B, 1, S) — broadcast inside the kernel.
    ext_mask = ((1.0 - attention_mask.astype(jnp.float32))
                * -10000.0).reshape(B, 1, S)

    hidden = embeddings.reshape(B * S, H).astype(jnp.bfloat16)
    for layer in params["layers"]:
        qkv = fused_linear(hidden, layer["qkv_w"], layer["qkv_b"])     # (B*S, 3H)
        ctx = attention(qkv.reshape(B, S, 3 * H), ext_mask,
                        num_heads=num_heads)                           # (B, S, H)
        hidden = fused_linear(ctx.reshape(B * S, H),
                              layer["ao_w"], layer["ao_b"],
                              residual=hidden,
                              gamma=layer["aln_g"], beta=layer["aln_b"])
        inter = fused_linear(hidden, layer["i_w"], layer["i_b"],
                             activation="gelu")
        hidden = fused_linear(inter, layer["o_w"], layer["o_b"],
                              residual=hidden,
                              gamma=layer["oln_g"], beta=layer["oln_b"])

    first_token = hidden.reshape(B, S, H)[:, 0, :]                     # (B, H)
    return pooler_head(first_token, params["pool_w"], params["pool_b"],
                       params["fc_w"], params["fc_b"])                 # (B,)


if __name__ == "__main__":
    B, S, H = 2, 8, 32
    NUM_LAYERS, NUM_HEADS, INTERMEDIATE = 2, 4, 64

    key = jax.random.PRNGKey(0)
    pkey, xkey = jax.random.split(key)
    raw_params = init_params(pkey, num_layers=NUM_LAYERS, hidden=H,
                             intermediate=INTERMEDIATE)
    params = prepare_params(raw_params, num_heads=NUM_HEADS)
    embeddings = jax.random.normal(xkey, (B, S, H), jnp.float32)

    out = bert_wrapper_forward(params, embeddings, num_heads=NUM_HEADS)
    out = jax.block_until_ready(out)
    assert out.shape == (B,)
    assert bool(jnp.all((out >= 0.0) & (out <= 1.0)))
    print("KERNEL_OK")
</pallas_src>

<mosaic_0001>
module attributes {stable_mosaic.version = 11 : i64} {
  func.func @_linear_kernel(%arg0: i32, %arg1: i32, %arg2: i32, %arg3: memref<16x32xbf16, #tpu.memory_space<vmem>>, %arg4: memref<32x96xbf16, #tpu.memory_space<vmem>>, %arg5: memref<1x96xf32, #tpu.memory_space<vmem>>, %arg6: memref<16x96xbf16, #tpu.memory_space<vmem>>, %arg7: memref<16x96xf32, #tpu.memory_space<vmem>>) attributes {dimension_semantics = [#tpu.dimension_semantics<parallel>, #tpu.dimension_semantics<parallel>, #tpu.dimension_semantics<arbitrary>], iteration_bounds = array<i64: 1, 1, 1>, scalar_prefetch = 0 : i64, scratch_operands = 1 : i64, tpu.core_type = #tpu.core_type<tc>, window_params = [{transform_indices = @transform_0, window_bounds = array<i64: 16, 32>}, {transform_indices = @transform_1, window_bounds = array<i64: 32, 96>}, {transform_indices = @transform_2, window_bounds = array<i64: 1, 96>}, {transform_indices = @transform_3, window_bounds = array<i64: 16, 96>}]} {
    %c0_i32 = arith.constant 0 : i32
    %0 = arith.cmpi eq, %arg2, %c0_i32 : i32
    %1 = arith.extui %0 : i1 to i32
    %c0_i32_0 = arith.constant 0 : i32
    %2 = arith.cmpi ne, %1, %c0_i32_0 : i32
    scf.if %2 {
      %cst_10 = arith.constant 0.000000e+00 : f32
      %12 = vector.broadcast %cst_10 : f32 to vector<16x96xf32>
      %c0_11 = arith.constant 0 : index
      %c0_12 = arith.constant 0 : index
      %13 = vector.load %arg7[%c0_11, %c0_12] : memref<16x96xf32, #tpu.memory_space<vmem>>, vector<16x96xf32>
      tpu.vector_store %arg7[%c0_11, %c0_12], %12 {strides = array<i32>} : memref<16x96xf32, #tpu.memory_space<vmem>>, vector<16x96xf32>,
    } else {
    }
    %c0 = arith.constant 0 : index
    %c0_1 = arith.constant 0 : index
    %3 = vector.load %arg7[%c0, %c0_1] : memref<16x96xf32, #tpu.memory_space<vmem>>, vector<16x96xf32>
    %c0_2 = arith.constant 0 : index
    %c0_3 = arith.constant 0 : index
    %4 = vector.load %arg3[%c0_2, %c0_3] : memref<16x32xbf16, #tpu.memory_space<vmem>>, vector<16x32xbf16>
    %c0_4 = arith.constant 0 : index
    %c0_5 = arith.constant 0 : index
    %5 = vector.load %arg4[%c0_4, %c0_5] : memref<32x96xbf16, #tpu.memory_space<vmem>>, vector<32x96xbf16>
    %cst = arith.constant dense<0.000000e+00> : vector<16x96xf32>
    %6 = tpu.matmul %4, %5, %cst {dimension_numbers = #tpu.dot_dimension_numbers<[1], [0], [0], [1], [0, 0, 1, 1], [], []>} : vector<16x32xbf16>, vector<32x96xbf16>, vector<16x96xf32> -> vector<16x96xf32>
    %7 = arith.addf %3, %6 : vector<16x96xf32>
    %c0_6 = arith.constant 0 : index
    %c0_7 = arith.constant 0 : index
    %8 = vector.load %arg7[%c0_6, %c0_7] : memref<16x96xf32, #tpu.memory_space<vmem>>, vector<16x96xf32>
    tpu.vector_store %arg7[%c0_6, %c0_7], %7 {strides = array<i32>} : memref<16x96xf32, #tpu.memory_space<vmem>>, vector<16x96xf32>,
    %c0_i32_8 = arith.constant 0 : i32
    %9 = arith.cmpi eq, %arg2, %c0_i32_8 : i32
    %10 = arith.extui %9 : i1 to i32
    %c0_i32_9 = arith.constant 0 : i32
    %11 = arith.cmpi ne, %10, %c0_i32_9 : i32
    scf.if %11 {
      %c0_10 = arith.constant 0 : index
      %c0_11 = arith.constant 0 : index
      %12 = vector.load %arg7[%c0_10, %c0_11] : memref<16x96xf32, #tpu.memory_space<vmem>>, vector<16x96xf32>
      %c0_12 = arith.constant 0 : index
      %c0_13 = arith.constant 0 : index
      %13 = vector.load %arg5[%c0_12, %c0_13] : memref<1x96xf32, #tpu.memory_space<vmem>>, vector<1x96xf32>
      %14 = vector.broadcast %13 : vector<1x96xf32> to vector<16x96xf32>
      %15 = arith.addf %12, %14 : vector<16x96xf32>
      %16 = arith.truncf %15 : vector<16x96xf32> to vector<16x96xbf16>
      %c0_14 = arith.constant 0 : index
      %c0_15 = arith.constant 0 : index
      %17 = vector.load %arg6[%c0_14, %c0_15] : memref<16x96xbf16, #tpu.memory_space<vmem>>, vector<16x96xbf16>
      tpu.vector_store %arg6[%c0_14, %c0_15], %16 {strides = array<i32>} : memref<16x96xbf16, #tpu.memory_space<vmem>>, vector<16x96xbf16>,
    } else {
    }
    return
  }
  func.func @transform_0(%arg0: i32, %arg1: i32, %arg2: i32) -> (i32, i32) {
    %c0_i32 = arith.constant 0 : i32
    return %arg0, %arg2 : i32, i32
  }
  func.func @transform_1(%arg0: i32, %arg1: i32, %arg2: i32) -> (i32, i32) {
    %c0_i32 = arith.constant 0 : i32
    return %arg2, %arg1 : i32, i32
  }
  func.func @transform_2(%arg0: i32, %arg1: i32, %arg2: i32) -> (i32, i32) {
    %c0_i32 = arith.constant 0 : i32
    %c0_i32_0 = arith.constant 0 : i32
    return %c0_i32, %arg1 : i32, i32
  }
  func.func @transform_3(%arg0: i32, %arg1: i32, %arg2: i32) -> (i32, i32) {
    %c0_i32 = arith.constant 0 : i32
    return %arg0, %arg1 : i32, i32
  }
}

module attributes {stable_mosaic.version = 11 : i64} {
  func.func @_attention_kernel(%arg0: i32, %arg1: i32, %arg2: memref<1x8x96xbf16, #tpu.memory_space<vmem>>, %arg3: memref<1x1x8xf32, #tpu.memory_space<vmem>>, %arg4: memref<1x8x32xbf16, #tpu.memory_space<vmem>>) attributes {dimension_semantics = [#tpu.dimension_semantics<parallel>, #tpu.dimension_semantics<parallel>], iteration_bounds = array<i64: 2, 1>, scalar_prefetch = 0 : i64, scratch_operands = 0 : i64, tpu.core_type = #tpu.core_type<tc>, window_params = [{transform_indices = @transform_0, window_bounds = array<i64: 1, 8, 96>}, {transform_indices = @transform_1, window_bounds = array<i64: 1, 1, 8>}, {transform_indices = @transform_2, window_bounds = array<i64: 1, 8, 32>}]} {
    %c8_i32 = arith.constant 8 : i32
    %0 = arith.muli %arg1, %c8_i32 : i32
    %1 = tpu.assume_multiple %0, 8 : i32
    %c0 = arith.constant 0 : index
    %c0_0 = arith.constant 0 : index
    %c0_1 = arith.constant 0 : index
    %2 = vector.load %arg3[%c0, %c0_0, %c0_1] : memref<1x1x8xf32, #tpu.memory_space<vmem>>, vector<1x1x8xf32>
    %3 = vector.shape_cast %2 : vector<1x1x8xf32> to vector<1x8xf32>
    %c0_2 = arith.constant 0 : index
    %4 = arith.index_cast %1 : i32 to index
    %c0_3 = arith.constant 0 : index
    %5 = vector.load %arg2[%c0_2, %4, %c0_3] : memref<1x8x96xbf16, #tpu.memory_space<vmem>>, vector<1x8x32xbf16>
    %6 = vector.shape_cast %5 : vector<1x8x32xbf16> to vector<8x32xbf16>
    %c0_4 = arith.constant 0 : index
    %c0_5 = arith.constant 0 : index
    %c32 = arith.constant 32 : index
    %7 = vector.load %arg2[%c0_4, %c0_5, %c32] : memref<1x8x96xbf16, #tpu.memory_space<vmem>>, vector<1x8x32xbf16>
    %8 = vector.shape_cast %7 : vector<1x8x32xbf16> to vector<8x32xbf16>
    %c0_6 = arith.constant 0 : index
    %c0_7 = arith.constant 0 : index
    %c64 = arith.constant 64 : index
    %9 = vector.load %arg2[%c0_6, %c0_7, %c64] : memref<1x8x96xbf16, #tpu.memory_space<vmem>>, vector<1x8x32xbf16>
    %10 = vector.shape_cast %9 : vector<1x8x32xbf16> to vector<8x32xbf16>
    %11 = vector.extract_strided_slice %6 {offsets = [0, 0], sizes = [8, 8], strides = [1, 1]} : vector<8x32xbf16> to vector<8x8xbf16>
    %12 = vector.extract_strided_slice %8 {offsets = [0, 0], sizes = [8, 8], strides = [1, 1]} : vector<8x32xbf16> to vector<8x8xbf16>
    %13 = vector.extract_strided_slice %10 {offsets = [0, 0], sizes = [8, 8], strides = [1, 1]} : vector<8x32xbf16> to vector<8x8xbf16>
    %cst = arith.constant dense<0.000000e+00> : vector<8x8xf32>
    %14 = tpu.matmul %11, %12, %cst {dimension_numbers = #tpu.dot_dimension_numbers<[1], [1], [0], [0], [0, 0, 1, 0], [], []>} : vector<8x8xbf16>, vector<8x8xbf16>, vector<8x8xf32> -> vector<8x8xf32>
    %15 = vector.broadcast %3 : vector<1x8xf32> to vector<8x8xf32>
    %16 = arith.addf %14, %15 : vector<8x8xf32>
    %cst_8 = arith.constant dense<0xFF800000> : vector<8xf32>
    %17 = vector.multi_reduction <maximumf>, %16, %cst_8 [1] : vector<8x8xf32> to vector<8xf32>
    %18 = vector.shape_cast %17 : vector<8xf32> to vector<8x1xf32>
    %19 = vector.broadcast %18 : vector<8x1xf32> to vector<8x8xf32>
    %20 = arith.subf %16, %19 : vector<8x8xf32>
    %21 = arith.truncf %20 : vector<8x8xf32> to vector<8x8xbf16>
    %22 = math.exp %21 : vector<8x8xbf16>
    %23 = arith.extf %22 : vector<8x8xbf16> to vector<8x8xf32>
    %cst_9 = arith.constant dense<0.000000e+00> : vector<8xf32>
    %24 = vector.multi_reduction <add>, %23, %cst_9 [1] : vector<8x8xf32> to vector<8xf32>
    %25 = vector.shape_cast %24 : vector<8xf32> to vector<8x1xf32>
    %cst_10 = arith.constant dense<0.000000e+00> : vector<8x8xf32>
    %26 = tpu.matmul %22, %13, %cst_10 {dimension_numbers = #tpu.dot_dimension_numbers<[1], [0], [0], [1], [0, 0, 1, 1], [], []>} : vector<8x8xbf16>, vector<8x8xbf16>, vector<8x8xf32> -> vector<8x8xf32>
    %27 = tpu.reciprocal %25 {approx = true} : vector<8x1xf32> -> vector<8x1xf32>
    %28 = vector.broadcast %27 : vector<8x1xf32> to vector<8x8xf32>
    %29 = arith.mulf %26, %28 : vector<8x8xf32>
    %30 = vector.extract_strided_slice %6 {offsets = [0, 8], sizes = [8, 8], strides = [1, 1]} : vector<8x32xbf16> to vector<8x8xbf16>
    %31 = vector.extract_strided_slice %8 {offsets = [0, 8], sizes = [8, 8], strides = [1, 1]} : vector<8x32xbf16> to vector<8x8xbf16>
    %32 = vector.extract_strided_slice %10 {offsets = [0, 8], sizes = [8, 8], strides = [1, 1]} : vector<8x32xbf16> to vector<8x8xbf16>
    %cst_11 = arith.constant dense<0.000000e+00> : vector<8x8xf32>
    %33 = tpu.matmul %30, %31, %cst_11 {dimension_numbers = #tpu.dot_dimension_numbers<[1], [1], [0], [0], [0, 0, 1, 0], [], []>} : vector<8x8xbf16>, vector<8x8xbf16>, vector<8x8xf32> -> vector<8x8xf32>
    %34 = vector.broadcast %3 : vector<1x8xf32> to vector<8x8xf32>
    %35 = arith.addf %33, %34 : vector<8x8xf32>
    %cst_12 = arith.constant dense<0xFF800000> : vector<8xf32>
    %36 = vector.multi_reduction <maximumf>, %35, %cst_12 [1] : vector<8x8xf32> to vector<8xf32>
    %37 = vector.shape_cast %36 : vector<8xf32> to vector<8x1xf32>
    %38 = vector.broadcast %37 : vector<8x1xf32> to vector<8x8xf32>
    %39 = arith.subf %35, %38 : vector<8x8xf32>
    %40 = arith.truncf %39 : vector<8x8xf32> to vector<8x8xbf16>
    %41 = math.exp %40 : vector<8x8xbf16>
    %42 = arith.extf %41 : vector<8x8xbf16> to vector<8x8xf32>
    %cst_13 = arith.constant dense<0.000000e+00> : vector<8xf32>
    %43 = vector.multi_reduction <add>, %42, %cst_13 [1] : vector<8x8xf32> to vector<8xf32>
    %44 = vector.shape_cast %43 : vector<8xf32> to vector<8x1xf32>
    %cst_14 = arith.constant dense<0.000000e+00> : vector<8x8xf32>
    %45 = tpu.matmul %41, %32, %cst_14 {dimension_numbers = #tpu.dot_dimension_numbers<[1], [0], [0], [1], [0, 0, 1, 1], [], []>} : vector<8x8xbf16>, vector<8x8xbf16>, vector<8x8xf32> -> vector<8x8xf32>
    %46 = tpu.reciprocal %44 {approx = true} : vector<8x1xf32> -> vector<8x1xf32>
    %47 = vector.broadcast %46 : vector<8x1xf32> to vector<8x8xf32>
    %48 = arith.mulf %45, %47 : vector<8x8xf32>
    %49 = vector.extract_strided_slice %6 {offsets = [0, 16], sizes = [8, 8], strides = [1, 1]} : vector<8x32xbf16> to vector<8x8xbf16>
    %50 = vector.extract_strided_slice %8 {offsets = [0, 16], sizes = [8, 8], strides = [1, 1]} : vector<8x32xbf16> to vector<8x8xbf16>
    %51 = vector.extract_strided_slice %10 {offsets = [0, 16], sizes = [8, 8], strides = [1, 1]} : vector<8x32xbf16> to vector<8x8xbf16>
    %cst_15 = arith.constant dense<0.000000e+00> : vector<8x8xf32>
    %52 = tpu.matmul %49, %50, %cst_15 {dimension_numbers = #tpu.dot_dimension_numbers<[1], [1], [0], [0], [0, 0, 1, 0], [], []>} : vector<8x8xbf16>, vector<8x8xbf16>, vector<8x8xf32> -> vector<8x8xf32>
    %53 = vector.broadcast %3 : vector<1x8xf32> to vector<8x8xf32>
    %54 = arith.addf %52, %53 : vector<8x8xf32>
    %cst_16 = arith.constant dense<0xFF800000> : vector<8xf32>
    %55 = vector.multi_reduction <maximumf>, %54, %cst_16 [1] : vector<8x8xf32> to vector<8xf32>
    %56 = vector.shape_cast %55 : vector<8xf32> to vector<8x1xf32>
    %57 = vector.broadcast %56 : vector<8x1xf32> to vector<8x8xf32>
    %58 = arith.subf %54, %57 : vector<8x8xf32>
    %59 = arith.truncf %58 : vector<8x8xf32> to vector<8x8xbf16>
    %60 = math.exp %59 : vector<8x8xbf16>
    %61 = arith.extf %60 : vector<8x8xbf16> to vector<8x8xf32>
    %cst_17 = arith.constant dense<0.000000e+00> : vector<8xf32>
    %62 = vector.multi_reduction <add>, %61, %cst_17 [1] : vector<8x8xf32> to vector<8xf32>
    %63 = vector.shape_cast %62 : vector<8xf32> to vector<8x1xf32>
    %cst_18 = arith.constant dense<0.000000e+00> : vector<8x8xf32>
    %64 = tpu.matmul %60, %51, %cst_18 {dimension_numbers = #tpu.dot_dimension_numbers<[1], [0], [0], [1], [0, 0, 1, 1], [], []>} : vector<8x8xbf16>, vector<8x8xbf16>, vector<8x8xf32> -> vector<8x8xf32>
    %65 = tpu.reciprocal %63 {approx = true} : vector<8x1xf32> -> vector<8x1xf32>
    %66 = vector.broadcast %65 : vector<8x1xf32> to vector<8x8xf32>
    %67 = arith.mulf %64, %66 : vector<8x8xf32>
    %68 = vector.extract_strided_slice %6 {offsets = [0, 24], sizes = [8, 8], strides = [1, 1]} : vector<8x32xbf16> to vector<8x8xbf16>
    %69 = vector.extract_strided_slice %8 {offsets = [0, 24], sizes = [8, 8], strides = [1, 1]} : vector<8x32xbf16> to vector<8x8xbf16>
    %70 = vector.extract_strided_slice %10 {offsets = [0, 24], sizes = [8, 8], strides = [1, 1]} : vector<8x32xbf16> to vector<8x8xbf16>
    %cst_19 = arith.constant dense<0.000000e+00> : vector<8x8xf32>
    %71 = tpu.matmul %68, %69, %cst_19 {dimension_numbers = #tpu.dot_dimension_numbers<[1], [1], [0], [0], [0, 0, 1, 0], [], []>} : vector<8x8xbf16>, vector<8x8xbf16>, vector<8x8xf32> -> vector<8x8xf32>
    %72 = vector.broadcast %3 : vector<1x8xf32> to vector<8x8xf32>
    %73 = arith.addf %71, %72 : vector<8x8xf32>
    %cst_20 = arith.constant dense<0xFF800000> : vector<8xf32>
    %74 = vector.multi_reduction <maximumf>, %73, %cst_20 [1] : vector<8x8xf32> to vector<8xf32>
    %75 = vector.shape_cast %74 : vector<8xf32> to vector<8x1xf32>
    %76 = vector.broadcast %75 : vector<8x1xf32> to vector<8x8xf32>
    %77 = arith.subf %73, %76 : vector<8x8xf32>
    %78 = arith.truncf %77 : vector<8x8xf32> to vector<8x8xbf16>
    %79 = math.exp %78 : vector<8x8xbf16>
    %80 = arith.extf %79 : vector<8x8xbf16> to vector<8x8xf32>
    %cst_21 = arith.constant dense<0.000000e+00> : vector<8xf32>
    %81 = vector.multi_reduction <add>, %80, %cst_21 [1] : vector<8x8xf32> to vector<8xf32>
    %82 = vector.shape_cast %81 : vector<8xf32> to vector<8x1xf32>
    %cst_22 = arith.constant dense<0.000000e+00> : vector<8x8xf32>
    %83 = tpu.matmul %79, %70, %cst_22 {dimension_numbers = #tpu.dot_dimension_numbers<[1], [0], [0], [1], [0, 0, 1, 1], [], []>} : vector<8x8xbf16>, vector<8x8xbf16>, vector<8x8xf32> -> vector<8x8xf32>
    %84 = tpu.reciprocal %82 {approx = true} : vector<8x1xf32> -> vector<8x1xf32>
    %85 = vector.broadcast %84 : vector<8x1xf32> to vector<8x8xf32>
    %86 = arith.mulf %83, %85 : vector<8x8xf32>
    %87 = tpu.concatenate %29, %48, %67, %86 in 1 : vector<8x8xf32>, vector<8x8xf32>, vector<8x8xf32>, vector<8x8xf32> -> vector<8x32xf32>
    %88 = arith.truncf %87 : vector<8x32xf32> to vector<8x32xbf16>
    %c0_23 = arith.constant 0 : index
    %c0_24 = arith.constant 0 : index
    %c0_25 = arith.constant 0 : index
    %89 = vector.load %arg4[%c0_23, %c0_24, %c0_25] : memref<1x8x32xbf16, #tpu.memory_space<vmem>>, vector<1x8x32xbf16>
    %90 = vector.shape_cast %89 : vector<1x8x32xbf16> to vector<8x32xbf16>
    %91 = vector.shape_cast %88 : vector<8x32xbf16> to vector<1x8x32xbf16>
    tpu.vector_store %arg4[%c0_23, %c0_24, %c0_25], %91 {strides = array<i32>} : memref<1x8x32xbf16, #tpu.memory_space<vmem>>, vector<1x8x32xbf16>,
    return
  }
  func.func @transform_0(%arg0: i32, %arg1: i32) -> (i32, i32, i32) {
    %c0_i32 = arith.constant 0 : i32
    %c0_i32_0 = arith.constant 0 : i32
    %c0_i32_1 = arith.constant 0 : i32
    return %arg0, %c0_i32, %c0_i32_0 : i32, i32, i32
  }
  func.func @transform_1(%arg0: i32, %arg1: i32) -> (i32, i32, i32) {
    %c0_i32 = arith.constant 0 : i32
    %c0_i32_0 = arith.constant 0 : i32
    %c0_i32_1 = arith.constant 0 : i32
    return %arg0, %c0_i32, %c0_i32_0 : i32, i32, i32
  }
  func.func @transform_2(%arg0: i32, %arg1: i32) -> (i32, i32, i32) {
    %c0_i32 = arith.constant 0 : i32
    %c0_i32_0 = arith.constant 0 : i32
    return %arg0, %arg1, %c0_i32 : i32, i32, i32
  }
}

module attributes {stable_mosaic.version = 11 : i64} {
  func.func @_linear_kernel(%arg0: i32, %arg1: i32, %arg2: i32, %arg3: memref<16x32xbf16, #tpu.memory_space<vmem>>, %arg4: memref<32x64xbf16, #tpu.memory_space<vmem>>, %arg5: memref<1x64xf32, #tpu.memory_space<vmem>>, %arg6: memref<16x64xbf16, #tpu.memory_space<vmem>>, %arg7: memref<16x64xf32, #tpu.memory_space<vmem>>) attributes {dimension_semantics = [#tpu.dimension_semantics<parallel>, #tpu.dimension_semantics<parallel>, #tpu.dimension_semantics<arbitrary>], iteration_bounds = array<i64: 1, 1, 1>, scalar_prefetch = 0 : i64, scratch_operands = 1 : i64, tpu.core_type = #tpu.core_type<tc>, window_params = [{transform_indices = @transform_0, window_bounds = array<i64: 16, 32>}, {transform_indices = @transform_1, window_bounds = array<i64: 32, 64>}, {transform_indices = @transform_2, window_bounds = array<i64: 1, 64>}, {transform_indices = @transform_3, window_bounds = array<i64: 16, 64>}]} {
    %c0_i32 = arith.constant 0 : i32
    %0 = arith.cmpi eq, %arg2, %c0_i32 : i32
    %1 = arith.extui %0 : i1 to i32
    %c0_i32_0 = arith.constant 0 : i32
    %2 = arith.cmpi ne, %1, %c0_i32_0 : i32
    scf.if %2 {
      %cst_10 = arith.constant 0.000000e+00 : f32
      %12 = vector.broadcast %cst_10 : f32 to vector<16x64xf32>
      %c0_11 = arith.constant 0 : index
      %c0_12 = arith.constant 0 : index
      %13 = vector.load %arg7[%c0_11, %c0_12] : memref<16x64xf32, #tpu.memory_space<vmem>>, vector<16x64xf32>
      tpu.vector_store %arg7[%c0_11, %c0_12], %12 {strides = array<i32>} : memref<16x64xf32, #tpu.memory_space<vmem>>, vector<16x64xf32>,
    } else {
    }
    %c0 = arith.constant 0 : index
    %c0_1 = arith.constant 0 : index
    %3 = vector.load %arg7[%c0, %c0_1] : memref<16x64xf32, #tpu.memory_space<vmem>>, vector<16x64xf32>
    %c0_2 = arith.constant 0 : index
    %c0_3 = arith.constant 0 : index
    %4 = vector.load %arg3[%c0_2, %c0_3] : memref<16x32xbf16, #tpu.memory_space<vmem>>, vector<16x32xbf16>
    %c0_4 = arith.constant 0 : index
    %c0_5 = arith.constant 0 : index
    %5 = vector.load %arg4[%c0_4, %c0_5] : memref<32x64xbf16, #tpu.memory_space<vmem>>, vector<32x64xbf16>
    %cst = arith.constant dense<0.000000e+00> : vector<16x64xf32>
    %6 = tpu.matmul %4, %5, %cst {dimension_numbers = #tpu.dot_dimension_numbers<[1], [0], [0], [1], [0, 0, 1, 1], [], []>} : vector<16x32xbf16>, vector<32x64xbf16>, vector<16x64xf32> -> vector<16x64xf32>
    %7 = arith.addf %3, %6 : vector<16x64xf32>
    %c0_6 = arith.constant 0 : index
    %c0_7 = arith.constant 0 : index
    %8 = vector.load %arg7[%c0_6, %c0_7] : memref<16x64xf32, #tpu.memory_space<vmem>>, vector<16x64xf32>
    tpu.vector_store %arg7[%c0_6, %c0_7], %7 {strides = array<i32>} : memref<16x64xf32, #tpu.memory_space<vmem>>, vector<16x64xf32>,
    %c0_i32_8 = arith.constant 0 : i32
    %9 = arith.cmpi eq, %arg2, %c0_i32_8 : i32
    %10 = arith.extui %9 : i1 to i32
    %c0_i32_9 = arith.constant 0 : i32
    %11 = arith.cmpi ne, %10, %c0_i32_9 : i32
    scf.if %11 {
      %c0_10 = arith.constant 0 : index
      %c0_11 = arith.constant 0 : index
      %12 = vector.load %arg7[%c0_10, %c0_11] : memref<16x64xf32, #tpu.memory_space<vmem>>, vector<16x64xf32>
      %c0_12 = arith.constant 0 : index
      %c0_13 = arith.constant 0 : index
      %13 = vector.load %arg5[%c0_12, %c0_13] : memref<1x64xf32, #tpu.memory_space<vmem>>, vector<1x64xf32>
      %14 = vector.broadcast %13 : vector<1x64xf32> to vector<16x64xf32>
      %15 = arith.addf %12, %14 : vector<16x64xf32>
      %cst_14 = arith.constant 5.000000e-01 : f32
      %16 = vector.broadcast %cst_14 : f32 to vector<16x64xf32>
      %17 = arith.mulf %16, %15 : vector<16x64xf32>
      %cst_15 = arith.constant 0.707106769 : f32
      %18 = vector.broadcast %cst_15 : f32 to vector<16x64xf32>
      %19 = arith.mulf %15, %18 : vector<16x64xf32>
      %20 = math.erf %19 : vector<16x64xf32>
      %cst_16 = arith.constant 1.000000e+00 : f32
      %21 = vector.broadcast %cst_16 : f32 to vector<16x64xf32>
      %22 = arith.addf %21, %20 : vector<16x64xf32>
      %23 = arith.mulf %17, %22 : vector<16x64xf32>
      %24 = arith.truncf %23 : vector<16x64xf32> to vector<16x64xbf16>
      %c0_17 = arith.constant 0 : index
      %c0_18 = arith.constant 0 : index
      %25 = vector.load %arg6[%c0_17, %c0_18] : memref<16x64xbf16, #tpu.memory_space<vmem>>, vector<16x64xbf16>
      tpu.vector_store %arg6[%c0_17, %c0_18], %24 {strides = array<i32>} : memref<16x64xbf16, #tpu.memory_space<vmem>>, vector<16x64xbf16>,
    } else {
    }
    return
  }
  func.func @transform_0(%arg0: i32, %arg1: i32, %arg2: i32) -> (i32, i32) {
    %c0_i32 = arith.constant 0 : i32
    return %arg0, %arg2 : i32, i32
  }
  func.func @transform_1(%arg0: i32, %arg1: i32, %arg2: i32) -> (i32, i32) {
    %c0_i32 = arith.constant 0 : i32
    return %arg2, %arg1 : i32, i32
  }
  func.func @transform_2(%arg0: i32, %arg1: i32, %arg2: i32) -> (i32, i32) {
    %c0_i32 = arith.constant 0 : i32
    %c0_i32_0 = arith.constant 0 : i32
    return %c0_i32, %arg1 : i32, i32
  }
  func.func @transform_3(%arg0: i32, %arg1: i32, %arg2: i32) -> (i32, i32) {
    %c0_i32 = arith.constant 0 : i32
    return %arg0, %arg1 : i32, i32
  }
}

module attributes {stable_mosaic.version = 11 : i64} {
  func.func @_linear_kernel(%arg0: i32, %arg1: i32, %arg2: i32, %arg3: memref<16x32xbf16, #tpu.memory_space<vmem>>, %arg4: memref<32x32xbf16, #tpu.memory_space<vmem>>, %arg5: memref<1x32xf32, #tpu.memory_space<vmem>>, %arg6: memref<16x32xbf16, #tpu.memory_space<vmem>>, %arg7: memref<1x32xf32, #tpu.memory_space<vmem>>, %arg8: memref<1x32xf32, #tpu.memory_space<vmem>>, %arg9: memref<16x32xbf16, #tpu.memory_space<vmem>>, %arg10: memref<16x32xf32, #tpu.memory_space<vmem>>) attributes {dimension_semantics = [#tpu.dimension_semantics<parallel>, #tpu.dimension_semantics<parallel>, #tpu.dimension_semantics<arbitrary>], iteration_bounds = array<i64: 1, 1, 1>, scalar_prefetch = 0 : i64, scratch_operands = 1 : i64, tpu.core_type = #tpu.core_type<tc>, window_params = [{transform_indices = @transform_0, window_bounds = array<i64: 16, 32>}, {transform_indices = @transform_1, window_bounds = array<i64: 32, 32>}, {transform_indices = @transform_2, window_bounds = array<i64: 1, 32>}, {transform_indices = @transform_3, window_bounds = array<i64: 16, 32>}, {transform_indices = @transform_4, window_bounds = array<i64: 1, 32>}, {transform_indices = @transform_5, window_bounds = array<i64: 1, 32>}, {transform_indices = @transform_6, window_bounds = array<i64: 16, 32>}]} {
    %c0_i32 = arith.constant 0 : i32
    %0 = arith.cmpi eq, %arg2, %c0_i32 : i32
    %1 = arith.extui %0 : i1 to i32
    %c0_i32_0 = arith.constant 0 : i32
    %2 = arith.cmpi ne, %1, %c0_i32_0 : i32
    scf.if %2 {
      %cst_10 = arith.constant 0.000000e+00 : f32
      %12 = vector.broadcast %cst_10 : f32 to vector<16x32xf32>
      %c0_11 = arith.constant 0 : index
      %c0_12 = arith.constant 0 : index
      %13 = vector.load %arg10[%c0_11, %c0_12] : memref<16x32xf32, #tpu.memory_space<vmem>>, vector<16x32xf32>
      tpu.vector_store %arg10[%c0_11, %c0_12], %12 {strides = array<i32>} : memref<16x32xf32, #tpu.memory_space<vmem>>, vector<16x32xf32>,
    } else {
    }
    %c0 = arith.constant 0 : index
    %c0_1 = arith.constant 0 : index
    %3 = vector.load %arg10[%c0, %c0_1] : memref<16x32xf32, #tpu.memory_space<vmem>>, vector<16x32xf32>
    %c0_2 = arith.constant 0 : index
    %c0_3 = arith.constant 0 : index
    %4 = vector.load %arg3[%c0_2, %c0_3] : memref<16x32xbf16, #tpu.memory_space<vmem>>, vector<16x32xbf16>
    %c0_4 = arith.constant 0 : index
    %c0_5 = arith.constant 0 : index
    %5 = vector.load %arg4[%c0_4, %c0_5] : memref<32x32xbf16, #tpu.memory_space<vmem>>, vector<32x32xbf16>
    %cst = arith.constant dense<0.000000e+00> : vector<16x32xf32>
    %6 = tpu.matmul %4, %5, %cst {dimension_numbers = #tpu.dot_dimension_numbers<[1], [0], [0], [1], [0, 0, 1, 1], [], []>} : vector<16x32xbf16>, vector<32x32xbf16>, vector<16x32xf32> -> vector<16x32xf32>
    %7 = arith.addf %3, %6 : vector<16x32xf32>
    %c0_6 = arith.constant 0 : index
    %c0_7 = arith.constant 0 : index
    %8 = vector.load %arg10[%c0_6, %c0_7] : memref<16x32xf32, #tpu.memory_space<vmem>>, vector<16x32xf32>
    tpu.vector_store %arg10[%c0_6, %c0_7], %7 {strides = array<i32>} : memref<16x32xf32, #tpu.memory_space<vmem>>, vector<16x32xf32>,
    %c0_i32_8 = arith.constant 0 : i32
    %9 = arith.cmpi eq, %arg2, %c0_i32_8 : i32
    %10 = arith.extui %9 : i1 to i32
    %c0_i32_9 = arith.constant 0 : i32
    %11 = arith.cmpi ne, %10, %c0_i32_9 : i32
    scf.if %11 {
      %c0_10 = arith.constant 0 : index
      %c0_11 = arith.constant 0 : index
      %12 = vector.load %arg10[%c0_10, %c0_11] : memref<16x32xf32, #tpu.memory_space<vmem>>, vector<16x32xf32>
      %c0_12 = arith.constant 0 : index
      %c0_13 = arith.constant 0 : index
      %13 = vector.load %arg5[%c0_12, %c0_13] : memref<1x32xf32, #tpu.memory_space<vmem>>, vector<1x32xf32>
      %14 = vector.broadcast %13 : vector<1x32xf32> to vector<16x32xf32>
      %15 = arith.addf %12, %14 : vector<16x32xf32>
      %c0_14 = arith.constant 0 : index
      %c0_15 = arith.constant 0 : index
      %16 = vector.load %arg6[%c0_14, %c0_15] : memref<16x32xbf16, #tpu.memory_space<vmem>>, vector<16x32xbf16>
      %17 = arith.extf %16 : vector<16x32xbf16> to vector<16x32xf32>
      %18 = arith.addf %15, %17 : vector<16x32xf32>
      %cst_16 = arith.constant dense<0.000000e+00> : vector<16xf32>
      %19 = vector.multi_reduction <add>, %18, %cst_16 [1] : vector<16x32xf32> to vector<16xf32>
      %20 = vector.shape_cast %19 : vector<16xf32> to vector<16x1xf32>
      %cst_17 = arith.constant 3.200000e+01 : f32
      %21 = vector.broadcast %cst_17 : f32 to vector<16x1xf32>
      %22 = arith.divf %20, %21 : vector<16x1xf32>
      %23 = vector.broadcast %22 : vector<16x1xf32> to vector<16x32xf32>
      %24 = arith.subf %18, %23 : vector<16x32xf32>
      %25 = vector.broadcast %22 : vector<16x1xf32> to vector<16x32xf32>
      %26 = arith.subf %18, %25 : vector<16x32xf32>
      %27 = arith.mulf %24, %26 : vector<16x32xf32>
      %cst_18 = arith.constant dense<0.000000e+00> : vector<16xf32>
      %28 = vector.multi_reduction <add>, %27, %cst_18 [1] : vector<16x32xf32> to vector<16xf32>
      %29 = vector.shape_cast %28 : vector<16xf32> to vector<16x1xf32>
      %cst_19 = arith.constant 3.200000e+01 : f32
      %30 = vector.broadcast %cst_19 : f32 to vector<16x1xf32>
      %31 = arith.divf %29, %30 : vector<16x1xf32>
      %32 = vector.broadcast %22 : vector<16x1xf32> to vector<16x32xf32>
      %33 = arith.subf %18, %32 : vector<16x32xf32>
      %cst_20 = arith.constant 9.99999996E-13 : f32
      %34 = vector.broadcast %cst_20 : f32 to vector<16x1xf32>
      %35 = arith.addf %31, %34 : vector<16x1xf32>
      %36 = math.rsqrt %35 : vector<16x1xf32>
      %37 = vector.broadcast %36 : vector<16x1xf32> to vector<16x32xf32>
      %38 = arith.mulf %33, %37 : vector<16x32xf32>
      %c0_21 = arith.constant 0 : index
      %c0_22 = arith.constant 0 : index
      %39 = vector.load %arg7[%c0_21, %c0_22] : memref<1x32xf32, #tpu.memory_space<vmem>>, vector<1x32xf32>
      %40 = vector.broadcast %39 : vector<1x32xf32> to vector<16x32xf32>
      %41 = arith.mulf %38, %40 : vector<16x32xf32>
      %c0_23 = arith.constant 0 : index
      %c0_24 = arith.constant 0 : index
      %42 = vector.load %arg8[%c0_23, %c0_24] : memref<1x32xf32, #tpu.memory_space<vmem>>, vector<1x32xf32>
      %43 = vector.broadcast %42 : vector<1x32xf32> to vector<16x32xf32>
      %44 = arith.addf %41, %43 : vector<16x32xf32>
      %45 = arith.truncf %44 : vector<16x32xf32> to vector<16x32xbf16>
      %c0_25 = arith.constant 0 : index
      %c0_26 = arith.constant 0 : index
      %46 = vector.load %arg9[%c0_25, %c0_26] : memref<16x32xbf16, #tpu.memory_space<vmem>>, vector<16x32xbf16>
      tpu.vector_store %arg9[%c0_25, %c0_26], %45 {strides = array<i32>} : memref<16x32xbf16, #tpu.memory_space<vmem>>, vector<16x32xbf16>,
    } else {
    }
    return
  }
  func.func @transform_0(%arg0: i32, %arg1: i32, %arg2: i32) -> (i32, i32) {
    %c0_i32 = arith.constant 0 : i32
    return %arg0, %arg2 : i32, i32
  }
  func.func @transform_1(%arg0: i32, %arg1: i32, %arg2: i32) -> (i32, i32) {
    %c0_i32 = arith.constant 0 : i32
    return %arg2, %arg1 : i32, i32
  }
  func.func @transform_2(%arg0: i32, %arg1: i32, %arg2: i32) -> (i32, i32) {
    %c0_i32 = arith.constant 0 : i32
    %c0_i32_0 = arith.constant 0 : i32
    return %c0_i32, %arg1 : i32, i32
  }
  func.func @transform_3(%arg0: i32, %arg1: i32, %arg2: i32) -> (i32, i32) {
    %c0_i32 = arith.constant 0 : i32
    return %arg0, %arg1 : i32, i32
  }
  func.func @transform_4(%arg0: i32, %arg1: i32, %arg2: i32) -> (i32, i32) {
    %c0_i32 = arith.constant 0 : i32
    %c0_i32_0 = arith.constant 0 : i32
    return %c0_i32, %arg1 : i32, i32
  }
  func.func @transform_5(%arg0: i32, %arg1: i32, %arg2: i32) -> (i32, i32) {
    %c0_i32 = arith.constant 0 : i32
    %c0_i32_0 = arith.constant 0 : i32
    return %c0_i32, %arg1 : i32, i32
  }
  func.func @transform_6(%arg0: i32, %arg1: i32, %arg2: i32) -> (i32, i32) {
    %c0_i32 = arith.constant 0 : i32
    return %arg0, %arg1 : i32, i32
  }
}

module attributes {stable_mosaic.version = 11 : i64} {
  func.func @_linear_kernel(%arg0: i32, %arg1: i32, %arg2: i32, %arg3: memref<16x64xbf16, #tpu.memory_space<vmem>>, %arg4: memref<64x32xbf16, #tpu.memory_space<vmem>>, %arg5: memref<1x32xf32, #tpu.memory_space<vmem>>, %arg6: memref<16x32xbf16, #tpu.memory_space<vmem>>, %arg7: memref<1x32xf32, #tpu.memory_space<vmem>>, %arg8: memref<1x32xf32, #tpu.memory_space<vmem>>, %arg9: memref<16x32xbf16, #tpu.memory_space<vmem>>, %arg10: memref<16x32xf32, #tpu.memory_space<vmem>>) attributes {dimension_semantics = [#tpu.dimension_semantics<parallel>, #tpu.dimension_semantics<parallel>, #tpu.dimension_semantics<arbitrary>], iteration_bounds = array<i64: 1, 1, 1>, scalar_prefetch = 0 : i64, scratch_operands = 1 : i64, tpu.core_type = #tpu.core_type<tc>, window_params = [{transform_indices = @transform_0, window_bounds = array<i64: 16, 64>}, {transform_indices = @transform_1, window_bounds = array<i64: 64, 32>}, {transform_indices = @transform_2, window_bounds = array<i64: 1, 32>}, {transform_indices = @transform_3, window_bounds = array<i64: 16, 32>}, {transform_indices = @transform_4, window_bounds = array<i64: 1, 32>}, {transform_indices = @transform_5, window_bounds = array<i64: 1, 32>}, {transform_indices = @transform_6, window_bounds = array<i64: 16, 32>}]} {
    %c0_i32 = arith.constant 0 : i32
    %0 = arith.cmpi eq, %arg2, %c0_i32 : i32
    %1 = arith.extui %0 : i1 to i32
    %c0_i32_0 = arith.constant 0 : i32
    %2 = arith.cmpi ne, %1, %c0_i32_0 : i32
    scf.if %2 {
      %cst_10 = arith.constant 0.000000e+00 : f32
      %12 = vector.broadcast %cst_10 : f32 to vector<16x32xf32>
      %c0_11 = arith.constant 0 : index
      %c0_12 = arith.constant 0 : index
      %13 = vector.load %arg10[%c0_11, %c0_12] : memref<16x32xf32, #tpu.memory_space<vmem>>, vector<16x32xf32>
      tpu.vector_store %arg10[%c0_11, %c0_12], %12 {strides = array<i32>} : memref<16x32xf32, #tpu.memory_space<vmem>>, vector<16x32xf32>,
    } else {
    }
    %c0 = arith.constant 0 : index
    %c0_1 = arith.constant 0 : index
    %3 = vector.load %arg10[%c0, %c0_1] : memref<16x32xf32, #tpu.memory_space<vmem>>, vector<16x32xf32>
    %c0_2 = arith.constant 0 : index
    %c0_3 = arith.constant 0 : index
    %4 = vector.load %arg3[%c0_2, %c0_3] : memref<16x64xbf16, #tpu.memory_space<vmem>>, vector<16x64xbf16>
    %c0_4 = arith.constant 0 : index
    %c0_5 = arith.constant 0 : index
    %5 = vector.load %arg4[%c0_4, %c0_5] : memref<64x32xbf16, #tpu.memory_space<vmem>>, vector<64x32xbf16>
    %cst = arith.constant dense<0.000000e+00> : vector<16x32xf32>
    %6 = tpu.matmul %4, %5, %cst {dimension_numbers = #tpu.dot_dimension_numbers<[1], [0], [0], [1], [0, 0, 1, 1], [], []>} : vector<16x64xbf16>, vector<64x32xbf16>, vector<16x32xf32> -> vector<16x32xf32>
    %7 = arith.addf %3, %6 : vector<16x32xf32>
    %c0_6 = arith.constant 0 : index
    %c0_7 = arith.constant 0 : index
    %8 = vector.load %arg10[%c0_6, %c0_7] : memref<16x32xf32, #tpu.memory_space<vmem>>, vector<16x32xf32>
    tpu.vector_store %arg10[%c0_6, %c0_7], %7 {strides = array<i32>} : memref<16x32xf32, #tpu.memory_space<vmem>>, vector<16x32xf32>,
    %c0_i32_8 = arith.constant 0 : i32
    %9 = arith.cmpi eq, %arg2, %c0_i32_8 : i32
    %10 = arith.extui %9 : i1 to i32
    %c0_i32_9 = arith.constant 0 : i32
    %11 = arith.cmpi ne, %10, %c0_i32_9 : i32
    scf.if %11 {
      %c0_10 = arith.constant 0 : index
      %c0_11 = arith.constant 0 : index
      %12 = vector.load %arg10[%c0_10, %c0_11] : memref<16x32xf32, #tpu.memory_space<vmem>>, vector<16x32xf32>
      %c0_12 = arith.constant 0 : index
      %c0_13 = arith.constant 0 : index
      %13 = vector.load %arg5[%c0_12, %c0_13] : memref<1x32xf32, #tpu.memory_space<vmem>>, vector<1x32xf32>
      %14 = vector.broadcast %13 : vector<1x32xf32> to vector<16x32xf32>
      %15 = arith.addf %12, %14 : vector<16x32xf32>
      %c0_14 = arith.constant 0 : index
      %c0_15 = arith.constant 0 : index
      %16 = vector.load %arg6[%c0_14, %c0_15] : memref<16x32xbf16, #tpu.memory_space<vmem>>, vector<16x32xbf16>
      %17 = arith.extf %16 : vector<16x32xbf16> to vector<16x32xf32>
      %18 = arith.addf %15, %17 : vector<16x32xf32>
      %cst_16 = arith.constant dense<0.000000e+00> : vector<16xf32>
      %19 = vector.multi_reduction <add>, %18, %cst_16 [1] : vector<16x32xf32> to vector<16xf32>
      %20 = vector.shape_cast %19 : vector<16xf32> to vector<16x1xf32>
      %cst_17 = arith.constant 3.200000e+01 : f32
      %21 = vector.broadcast %cst_17 : f32 to vector<16x1xf32>
      %22 = arith.divf %20, %21 : vector<16x1xf32>
      %23 = vector.broadcast %22 : vector<16x1xf32> to vector<16x32xf32>
      %24 = arith.subf %18, %23 : vector<16x32xf32>
      %25 = vector.broadcast %22 : vector<16x1xf32> to vector<16x32xf32>
      %26 = arith.subf %18, %25 : vector<16x32xf32>
      %27 = arith.mulf %24, %26 : vector<16x32xf32>
      %cst_18 = arith.constant dense<0.000000e+00> : vector<16xf32>
      %28 = vector.multi_reduction <add>, %27, %cst_18 [1] : vector<16x32xf32> to vector<16xf32>
      %29 = vector.shape_cast %28 : vector<16xf32> to vector<16x1xf32>
      %cst_19 = arith.constant 3.200000e+01 : f32
      %30 = vector.broadcast %cst_19 : f32 to vector<16x1xf32>
      %31 = arith.divf %29, %30 : vector<16x1xf32>
      %32 = vector.broadcast %22 : vector<16x1xf32> to vector<16x32xf32>
      %33 = arith.subf %18, %32 : vector<16x32xf32>
      %cst_20 = arith.constant 9.99999996E-13 : f32
      %34 = vector.broadcast %cst_20 : f32 to vector<16x1xf32>
      %35 = arith.addf %31, %34 : vector<16x1xf32>
      %36 = math.rsqrt %35 : vector<16x1xf32>
      %37 = vector.broadcast %36 : vector<16x1xf32> to vector<16x32xf32>
      %38 = arith.mulf %33, %37 : vector<16x32xf32>
      %c0_21 = arith.constant 0 : index
      %c0_22 = arith.constant 0 : index
      %39 = vector.load %arg7[%c0_21, %c0_22] : memref<1x32xf32, #tpu.memory_space<vmem>>, vector<1x32xf32>
      %40 = vector.broadcast %39 : vector<1x32xf32> to vector<16x32xf32>
      %41 = arith.mulf %38, %40 : vector<16x32xf32>
      %c0_23 = arith.constant 0 : index
      %c0_24 = arith.constant 0 : index
      %42 = vector.load %arg8[%c0_23, %c0_24] : memref<1x32xf32, #tpu.memory_space<vmem>>, vector<1x32xf32>
      %43 = vector.broadcast %42 : vector<1x32xf32> to vector<16x32xf32>
      %44 = arith.addf %41, %43 : vector<16x32xf32>
      %45 = arith.truncf %44 : vector<16x32xf32> to vector<16x32xbf16>
      %c0_25 = arith.constant 0 : index
      %c0_26 = arith.constant 0 : index
      %46 = vector.load %arg9[%c0_25, %c0_26] : memref<16x32xbf16, #tpu.memory_space<vmem>>, vector<16x32xbf16>
      tpu.vector_store %arg9[%c0_25, %c0_26], %45 {strides = array<i32>} : memref<16x32xbf16, #tpu.memory_space<vmem>>, vector<16x32xbf16>,
    } else {
    }
    return
  }
  func.func @transform_0(%arg0: i32, %arg1: i32, %arg2: i32) -> (i32, i32) {
    %c0_i32 = arith.constant 0 : i32
    return %arg0, %arg2 : i32, i32
  }
  func.func @transform_1(%arg0: i32, %arg1: i32, %arg2: i32) -> (i32, i32) {
    %c0_i32 = arith.constant 0 : i32
    return %arg2, %arg1 : i32, i32
  }
  func.func @transform_2(%arg0: i32, %arg1: i32, %arg2: i32) -> (i32, i32) {
    %c0_i32 = arith.constant 0 : i32
    %c0_i32_0 = arith.constant 0 : i32
    return %c0_i32, %arg1 : i32, i32
  }
  func.func @transform_3(%arg0: i32, %arg1: i32, %arg2: i32) -> (i32, i32) {
    %c0_i32 = arith.constant 0 : i32
    return %arg0, %arg1 : i32, i32
  }
  func.func @transform_4(%arg0: i32, %arg1: i32, %arg2: i32) -> (i32, i32) {
    %c0_i32 = arith.constant 0 : i32
    %c0_i32_0 = arith.constant 0 : i32
    return %c0_i32, %arg1 : i32, i32
  }
  func.func @transform_5(%arg0: i32, %arg1: i32, %arg2: i32) -> (i32, i32) {
    %c0_i32 = arith.constant 0 : i32
    %c0_i32_0 = arith.constant 0 : i32
    return %c0_i32, %arg1 : i32, i32
  }
  func.func @transform_6(%arg0: i32, %arg1: i32, %arg2: i32) -> (i32, i32) {
    %c0_i32 = arith.constant 0 : i32
    return %arg0, %arg1 : i32, i32
  }
}

module attributes {stable_mosaic.version = 11 : i64} {
  func.func @_pooler_head_kernel(%arg0: memref<2x32xbf16, #tpu.memory_space<vmem>>, %arg1: memref<32x32xbf16, #tpu.memory_space<vmem>>, %arg2: memref<1x32xf32, #tpu.memory_space<vmem>>, %arg3: memref<32x1xbf16, #tpu.memory_space<vmem>>, %arg4: memref<1x1xf32, #tpu.memory_space<vmem>>, %arg5: memref<2x1xf32, #tpu.memory_space<vmem>>) attributes {dimension_semantics = [], scalar_prefetch = 0 : i64, scratch_operands = 0 : i64, tpu.core_type = #tpu.core_type<tc>} {
    %c0 = arith.constant 0 : index
    %c0_0 = arith.constant 0 : index
    %0 = vector.load %arg0[%c0, %c0_0] : memref<2x32xbf16, #tpu.memory_space<vmem>>, vector<2x32xbf16>
    %c0_1 = arith.constant 0 : index
    %c0_2 = arith.constant 0 : index
    %1 = vector.load %arg1[%c0_1, %c0_2] : memref<32x32xbf16, #tpu.memory_space<vmem>>, vector<32x32xbf16>
    %cst = arith.constant dense<0.000000e+00> : vector<2x32xf32>
    %2 = tpu.matmul %0, %1, %cst {dimension_numbers = #tpu.dot_dimension_numbers<[1], [0], [0], [1], [0, 0, 1, 1], [], []>} : vector<2x32xbf16>, vector<32x32xbf16>, vector<2x32xf32> -> vector<2x32xf32>
    %c0_3 = arith.constant 0 : index
    %c0_4 = arith.constant 0 : index
    %3 = vector.load %arg2[%c0_3, %c0_4] : memref<1x32xf32, #tpu.memory_space<vmem>>, vector<1x32xf32>
    %4 = vector.broadcast %3 : vector<1x32xf32> to vector<2x32xf32>
    %5 = arith.addf %2, %4 : vector<2x32xf32>
    %6 = math.tanh %5 : vector<2x32xf32>
    %7 = arith.truncf %6 : vector<2x32xf32> to vector<2x32xbf16>
    %c0_5 = arith.constant 0 : index
    %c0_6 = arith.constant 0 : index
    %8 = vector.load %arg3[%c0_5, %c0_6] : memref<32x1xbf16, #tpu.memory_space<vmem>>, vector<32x1xbf16>
    %cst_7 = arith.constant dense<0.000000e+00> : vector<2x1xf32>
    %9 = tpu.matmul %7, %8, %cst_7 {dimension_numbers = #tpu.dot_dimension_numbers<[1], [0], [0], [1], [0, 0, 1, 1], [], []>} : vector<2x32xbf16>, vector<32x1xbf16>, vector<2x1xf32> -> vector<2x1xf32>
    %c0_8 = arith.constant 0 : index
    %c0_9 = arith.constant 0 : index
    %10 = vector.load %arg4[%c0_8, %c0_9] : memref<1x1xf32, #tpu.memory_space<vmem>>, vector<1x1xf32>
    %11 = vector.broadcast %10 : vector<1x1xf32> to vector<2x1xf32>
    %12 = arith.addf %9, %11 : vector<2x1xf32>
    %cst_10 = arith.constant 0.000000e+00 : f32
    %13 = vector.broadcast %cst_10 : f32 to vector<2x1xf32>
    %14 = arith.subf %13, %12 : vector<2x1xf32>
    %15 = math.exp %14 : vector<2x1xf32>
    %cst_11 = arith.constant 1.000000e+00 : f32
    %16 = vector.broadcast %cst_11 : f32 to vector<2x1xf32>
    %17 = arith.addf %16, %15 : vector<2x1xf32>
    %cst_12 = arith.constant 1.000000e+00 : f32
    %18 = vector.broadcast %cst_12 : f32 to vector<2x1xf32>
    %19 = arith.divf %18, %17 : vector<2x1xf32>
    %c0_13 = arith.constant 0 : index
    %c0_14 = arith.constant 0 : index
    %20 = vector.load %arg5[%c0_13, %c0_14] : memref<2x1xf32, #tpu.memory_space<vmem>>, vector<2x1xf32>
    tpu.vector_store %arg5[%c0_13, %c0_14], %19 {strides = array<i32>} : memref<2x1xf32, #tpu.memory_space<vmem>>, vector<2x1xf32>,
    return
  }
}

</mosaic_0001>

<llo_original>
// kernel: bert_wrapper_forward.14
$region0: #{bert_wrapper_forward.14}
  #allocation0 [shape = 'u32[]', space=smem, size = 0x4, offset = 0x4, fixed_abs, tag = 'smem constant byte address 0x4 - core index']
  #allocation1 [shape = 'u32[144,128]{1,0:T(1,128)}', space=vmem, size = 0x12000, scoped, tag = 'internal scratch']
  #allocation2 [shape = 'f32[16,64]{1,0:T(8,128)}', space=vmem, size = 0x2000, scoped, tag = 'scratch operand']
  %s0 = inlined_call_operand.vmem [shape: bf16[16,32], index: 0, kind: input, shape index: {}]
  %s1 = inlined_call_operand.vmem [shape: bf16[32,64], index: 1, kind: input, shape index: {}]
  %s2 = inlined_call_operand.vmem [shape: f32[1,64], index: 2, kind: input, shape index: {}]
  %s3 = inlined_call_operand.vmem [shape: bf16[16,64], index: 3, kind: output, shape index: {}]
  %s4 = sld [smem:[#allocation0]]
  $region30: #{bert_wrapper_forward.14} parent=0
    _
  %s6 = ssub.s32 1, %s4
  %s7 = scalar_select 0, %s6, %s4
  // Predicated region
  $region2: #{bert_wrapper_forward.14} parent=0 // pred_check
    _
  $region3: #{bert_wrapper_forward.14} parent=0 // pred_check_branch
    %9 = sbr.rel (0) target = $region5
  $region4: #{bert_wrapper_forward.14} parent=0 // pred_region
    _
  $region5: #{bert_wrapper_forward.14} parent=0 // pred_fallthru
    _
  // Predicated region
  $region6: #{bert_wrapper_forward.14} parent=0 // pred_check
    _
  $region7: #{bert_wrapper_forward.14} parent=0 // pred_check_branch
    %11 = sbr.rel (0) target = $region9
  $region8: #{bert_wrapper_forward.14} parent=0 // pred_region
    _
  $region9: #{bert_wrapper_forward.14} parent=0 // pred_fallthru
    _
  // Predicated region
  $region10: #{bert_wrapper_forward.14} parent=0 // pred_check
    _
  $region11: #{bert_wrapper_forward.14} parent=0 // pred_check_branch
    %13 = sbr.rel (0) target = $region13
  $region12: #{bert_wrapper_forward.14} parent=0 // pred_region
    _
  $region13: #{bert_wrapper_forward.14} parent=0 // pred_fallthru
    _
  %p15 = scmp.eq.s32.totalorder 0, 0
  // Predicated region
  $region14: #{bert_wrapper_forward.14} parent=0 // pred_check
    %p16 = pneg %p15
  $region15: #{bert_wrapper_forward.14} parent=0 // pred_check_branch
    %18 = sbr.rel (%p16) target = $region17
  $region16: #{bert_wrapper_forward.14} parent=0 // pred_region
    %vm19 = vcmask 523264
    %20 = vst.msk [vmem:[#allocation2] sm:$0xff] %vm19, 0.0
    %21 = vst.msk [vmem:[#allocation2 + $0x8] sm:$0xff] %vm19, 0.0
  $region17: #{bert_wrapper_forward.14} parent=0 // pred_fallthru
    _
  %v22 = vld [vmem:[#allocation2] sm:$0xff]
  %v23 = vld [vmem:[#allocation2 + $0x8] sm:$0xff]
  %v24 = vld [vmem:[%s0] sm:$0xf]
  %v25 = vld [vmem:[%s0 + $0x4] sm:$0xf]
  %v26 = vld [vmem:[%s1] sm:$0xf]
  %v27 = vld [vmem:[%s1 + $0x4] sm:$0xf]
  %v28 = vld [vmem:[%s1 + $0x8] sm:$0xf]
  %v29 = vld [vmem:[%s1 + $0xc] sm:$0xf]
  %v32 = vunpack.c.l.b16 %v24
  %v33 = vunpack.c.l.b16 %v25
  %v34 = vpack.c.b16 %v33, %v32
  %v39 = vunpack.c.l.b16 %v26
  %v40 = vunpack.c.l.b16 %v27
  %v41 = vunpack.c.l.b16 %v28
  %v42 = vunpack.c.l.b16 %v29
  %v43 = vpack.c.b16 %v40, %v39
  %v44 = vpack.c.b16 %v42, %v41
  %vm47 = vcmask 261120
  %v49 = vsel %vm47, %v34, 0
  %51 = vmatprep.subr.bf16.mxu0 0
  %52 = vmatpush1.bf16.msra.mxu0 0
  %53 = vmatprep.subr.bf16.mxu0 0
  %54 = vmatpush1.bf16.msra.mxu0 0
  %55 = vmatprep.subr.bf16.mxu0 0
  %56 = vmatpush1.bf16.msra.mxu0 0
  %57 = vmatprep.subr.bf16.mxu0 0
  %58 = vmatpush1.bf16.msra.mxu0 0
  %59 = vmatprep.subr.bf16.mxu0 0
  %60 = vmatpush1.bf16.msra.mxu0 0
  %61 = vmatprep.subr.bf16.mxu0 0
  %62 = vmatpush1.bf16.msra.mxu0 0
  %63 = vmatprep.subr.bf16.mxu0 0
  %64 = vmatpush1.bf16.msra.mxu0 %v44
  %65 = vmatprep.subr.bf16.mxu0 0
  %66 = vmatpush1.bf16.msra.mxu0 %v43
  %67 = vmatprep.subr.bf16.mxu0 0
  %68 = vmatpush2.bf16.msra.mxu0 0
  %69 = vmatprep.subr.bf16.mxu0 0
  %70 = vmatpush2.bf16.msra.mxu0 0
  %71 = vmatprep.subr.bf16.mxu0 0
  %72 = vmatpush2.bf16.msra.mxu0 0
  %73 = vmatprep.subr.bf16.mxu0 0
  %74 = vmatpush2.bf16.msra.mxu0 0
  %75 = vmatprep.subr.bf16.mxu0 0
  %76 = vmatpush2.bf16.msra.mxu0 0
  %77 = vmatprep.subr.bf16.mxu0 0
  %78 = vmatpush2.bf16.msra.mxu0 0
  %79 = vmatprep.subr.bf16.mxu0 0
  %80 = vmatpush2.bf16.msra.mxu0 0
  %81 = vmatprep.subr.bf16.mxu0 0
  %82 = vmatpush2.bf16.msra.mxu0 0
  %83 = vmatprep.mubr.bf16.mxu0 0
  %84 = vmatmul.mubr.bf16.gmra.mxu0 %v49
  %v85 = vpop.f32.mrf.mxu0
  %v86 = vadd.f32 0.0, %v85
  %v87 = vpop.f32.mrf.mxu0
  %v88 = vpop.f32.mrf.mxu0
  %v89 = vadd.f32 0.0, %v88
  %v90 = vpop.f32.mrf.mxu0
  %91 = vdwg.mxu0
  %v92 = vadd.f32 %v22, %v86
  %v93 = vadd.f32 %v23, %v89
  %vm94 = vcmask 523264
  %95 = vst.msk [vmem:[#allocation2] sm:$0xff] %vm94, %v92
  %96 = vst.msk [vmem:[#allocation2 + $0x8] sm:$0xff] %vm94, %v93
  // Predicated region
  $region18: #{bert_wrapper_forward.14} parent=0 // pred_check
    %p97 = pneg %p15
  $region19: #{bert_wrapper_forward.14} parent=0 // pred_check_branch
    %99 = sbr.rel (%p97) target = $region21
  $region20: #{bert_wrapper_forward.14} parent=0 // pred_region
    %v100 = vld [vmem:[#allocation2] sm:$0xff]
    %v101 = vld [vmem:[#allocation2 + $0x8] sm:$0xff]
    %v102 = vld [vmem:[%s2] sm:$0x1]
    %v104 = vlaneseq
    %v105 = vshrl.u32 %v104, 7
    %v106 = vsub.s32 0, %v105
    %v107 = vrot.slane %v102, %v106
    %v109 = vadd.f32 %v100, %v107
    %v110 = vadd.f32 %v101, %v107
    %v111 = vmul.f32 %v109, 0.5
    %v112 = vmul.f32 %v110, 0.5
    %v113 = vmul.f32 %v109, 0.70710677
    %v114 = vmul.f32 %v110, 0.70710677
    %v115 = verf.f32.pop %v113
    %v116 = verf.f32.pop %v114
    %v117 = vadd.f32 %v115, 1.0
    %v118 = vadd.f32 %v116, 1.0
    %v119 = vmul.f32 %v111, %v117
    %v120 = vmul.f32 %v112, %v118
    %v121 = vpack.c.bf16 %v120, %v119
    %v123 = vunpack.c.l.b16 %v121
    %v124 = vunpack.c.h.b16 %v121
    %v125 = vpack.c.b16 %v123, %v123
    %v126 = vpack.c.b16 %v124, %v124
    %vm129 = vcmask 519168
    %130 = vst.msk [vmem:[%s3] sm:$0xf] %vm129, %v125
    %131 = vst.msk [vmem:[%s3 + $0x4] sm:$0xf] %vm129, %v126
  $region21: #{bert_wrapper_forward.14} parent=0 // pred_fallthru
    _
  // Predicated region
  $region22: #{bert_wrapper_forward.14} parent=0 // pred_check
    _
  $region23: #{bert_wrapper_forward.14} parent=0 // pred_check_branch
    %133 = sbr.rel (0) target = $region25
  $region24: #{bert_wrapper_forward.14} parent=0 // pred_region
    _
  $region25: #{bert_wrapper_forward.14} parent=0 // pred_fallthru
    _
  // Predicated region
  $region26: #{bert_wrapper_forward.14} parent=0 // pred_check
    _
  $region27: #{bert_wrapper_forward.14} parent=0 // pred_check_branch
    %135 = sbr.rel (0) target = $region29
  $region28: #{bert_wrapper_forward.14} parent=0 // pred_region
    _
  $region29: #{bert_wrapper_forward.14} parent=0 // pred_fallthru
    _

// kernel: bert_wrapper_forward.11
$region0: #{bert_wrapper_forward.11}
  #allocation0 [shape = 'u32[]', space=smem, size = 0x4, offset = 0x4, fixed_abs, tag = 'smem constant byte address 0x4 - core index']
  #allocation1 [shape = 'u32[144,128]{1,0:T(1,128)}', space=vmem, size = 0x12000, scoped, tag = 'internal scratch']
  #allocation2 [shape = 'f32[16,96]{1,0:T(8,128)}', space=vmem, size = 0x2000, scoped, tag = 'scratch operand']
  %s0 = inlined_call_operand.vmem [shape: bf16[16,32], index: 0, kind: input, shape index: {}]
  %s1 = inlined_call_operand.vmem [shape: bf16[32,96], index: 1, kind: input, shape index: {}]
  %s2 = inlined_call_operand.vmem [shape: f32[1,96], index: 2, kind: input, shape index: {}]
  %s3 = inlined_call_operand.vmem [shape: bf16[16,96], index: 3, kind: output, shape index: {}]
  %s4 = sld [smem:[#allocation0]]
  $region30: #{bert_wrapper_forward.11} parent=0
    _
  %s6 = ssub.s32 1, %s4
  %s7 = scalar_select 0, %s6, %s4
  // Predicated region
  $region2: #{bert_wrapper_forward.11} parent=0 // pred_check
    _
  $region3: #{bert_wrapper_forward.11} parent=0 // pred_check_branch
    %9 = sbr.rel (0) target = $region5
  $region4: #{bert_wrapper_forward.11} parent=0 // pred_region
    _
  $region5: #{bert_wrapper_forward.11} parent=0 // pred_fallthru
    _
  // Predicated region
  $region6: #{bert_wrapper_forward.11} parent=0 // pred_check
    _
  $region7: #{bert_wrapper_forward.11} parent=0 // pred_check_branch
    %11 = sbr.rel (0) target = $region9
  $region8: #{bert_wrapper_forward.11} parent=0 // pred_region
    _
  $region9: #{bert_wrapper_forward.11} parent=0 // pred_fallthru
    _
  // Predicated region
  $region10: #{bert_wrapper_forward.11} parent=0 // pred_check
    _
  $region11: #{bert_wrapper_forward.11} parent=0 // pred_check_branch
    %13 = sbr.rel (0) target = $region13
  $region12: #{bert_wrapper_forward.11} parent=0 // pred_region
    _
  $region13: #{bert_wrapper_forward.11} parent=0 // pred_fallthru
    _
  %p15 = scmp.eq.s32.totalorder 0, 0
  // Predicated region
  $region14: #{bert_wrapper_forward.11} parent=0 // pred_check
    %p16 = pneg %p15
  $region15: #{bert_wrapper_forward.11} parent=0 // pred_check_branch
    %18 = sbr.rel (%p16) target = $region17
  $region16: #{bert_wrapper_forward.11} parent=0 // pred_region
    %vm19 = vcmask 785408
    %20 = vst.msk [vmem:[#allocation2] sm:$0xff] %vm19, 0.0
    %21 = vst.msk [vmem:[#allocation2 + $0x8] sm:$0xff] %vm19, 0.0
  $region17: #{bert_wrapper_forward.11} parent=0 // pred_fallthru
    _
  %v22 = vld [vmem:[#allocation2] sm:$0xff]
  %v23 = vld [vmem:[#allocation2 + $0x8] sm:$0xff]
  %v24 = vld [vmem:[%s0] sm:$0xf]
  %v25 = vld [vmem:[%s0 + $0x4] sm:$0xf]
  %v26 = vld [vmem:[%s1] sm:$0xf]
  %v27 = vld [vmem:[%s1 + $0x4] sm:$0xf]
  %v28 = vld [vmem:[%s1 + $0x8] sm:$0xf]
  %v29 = vld [vmem:[%s1 + $0xc] sm:$0xf]
  %v32 = vunpack.c.l.b16 %v24
  %v33 = vunpack.c.l.b16 %v25
  %v34 = vpack.c.b16 %v33, %v32
  %v39 = vunpack.c.l.b16 %v26
  %v40 = vunpack.c.l.b16 %v27
  %v41 = vunpack.c.l.b16 %v28
  %v42 = vunpack.c.l.b16 %v29
  %v43 = vpack.c.b16 %v40, %v39
  %v44 = vpack.c.b16 %v42, %v41
  %vm47 = vcmask 261120
  %v49 = vsel %vm47, %v34, 0
  %51 = vmatprep.subr.bf16.mxu0 0
  %52 = vmatpush1.bf16.msra.mxu0 0
  %53 = vmatprep.subr.bf16.mxu0 0
  %54 = vmatpush1.bf16.msra.mxu0 0
  %55 = vmatprep.subr.bf16.mxu0 0
  %56 = vmatpush1.bf16.msra.mxu0 0
  %57 = vmatprep.subr.bf16.mxu0 0
  %58 = vmatpush1.bf16.msra.mxu0 0
  %59 = vmatprep.subr.bf16.mxu0 0
  %60 = vmatpush1.bf16.msra.mxu0 0
  %61 = vmatprep.subr.bf16.mxu0 0
  %62 = vmatpush1.bf16.msra.mxu0 0
  %63 = vmatprep.subr.bf16.mxu0 0
  %64 = vmatpush1.bf16.msra.mxu0 %v44
  %65 = vmatprep.subr.bf16.mxu0 0
  %66 = vmatpush1.bf16.msra.mxu0 %v43
  %67 = vmatprep.subr.bf16.mxu0 0
  %68 = vmatpush2.bf16.msra.mxu0 0
  %69 = vmatprep.subr.bf16.mxu0 0
  %70 = vmatpush2.bf16.msra.mxu0 0
  %71 = vmatprep.subr.bf16.mxu0 0
  %72 = vmatpush2.bf16.msra.mxu0 0
  %73 = vmatprep.subr.bf16.mxu0 0
  %74 = vmatpush2.bf16.msra.mxu0 0
  %75 = vmatprep.subr.bf16.mxu0 0
  %76 = vmatpush2.bf16.msra.mxu0 0
  %77 = vmatprep.subr.bf16.mxu0 0
  %78 = vmatpush2.bf16.msra.mxu0 0
  %79 = vmatprep.subr.bf16.mxu0 0
  %80 = vmatpush2.bf16.msra.mxu0 0
  %81 = vmatprep.subr.bf16.mxu0 0
  %82 = vmatpush2.bf16.msra.mxu0 0
  %83 = vmatprep.mubr.bf16.mxu0 0
  %84 = vmatmul.mubr.bf16.gmra.mxu0 %v49
  %v85 = vpop.f32.mrf.mxu0
  %v86 = vadd.f32 0.0, %v85
  %v87 = vpop.f32.mrf.mxu0
  %v88 = vpop.f32.mrf.mxu0
  %v89 = vadd.f32 0.0, %v88
  %v90 = vpop.f32.mrf.mxu0
  %91 = vdwg.mxu0
  %v92 = vadd.f32 %v22, %v86
  %v93 = vadd.f32 %v23, %v89
  %vm94 = vcmask 785408
  %95 = vst.msk [vmem:[#allocation2] sm:$0xff] %vm94, %v92
  %96 = vst.msk [vmem:[#allocation2 + $0x8] sm:$0xff] %vm94, %v93
  // Predicated region
  $region18: #{bert_wrapper_forward.11} parent=0 // pred_check
    %p97 = pneg %p15
  $region19: #{bert_wrapper_forward.11} parent=0 // pred_check_branch
    %99 = sbr.rel (%p97) target = $region21
  $region20: #{bert_wrapper_forward.11} parent=0 // pred_region
    %v100 = vld [vmem:[#allocation2] sm:$0xff]
    %v101 = vld [vmem:[#allocation2 + $0x8] sm:$0xff]
    %v102 = vld [vmem:[%s2] sm:$0x1]
    %v104 = vlaneseq
    %v105 = vshrl.u32 %v104, 7
    %v106 = vsub.s32 0, %v105
    %v107 = vrot.slane %v102, %v106
    %v109 = vadd.f32 %v100, %v107
    %v110 = vadd.f32 %v101, %v107
    %v111 = vpack.c.bf16 %v110, %v109
    %v113 = vunpack.c.l.b16 %v111
    %v114 = vunpack.c.h.b16 %v111
    %v115 = vpack.c.b16 %v113, %v113
    %v116 = vpack.c.b16 %v114, %v114
    %vm119 = vcmask 781312
    %120 = vst.msk [vmem:[%s3] sm:$0xf] %vm119, %v115
    %121 = vst.msk [vmem:[%s3 + $0x4] sm:$0xf] %vm119, %v116
  $region21: #{bert_wrapper_forward.11} parent=0 // pred_fallthru
    _
  // Predicated region
  $region22: #{bert_wrapper_forward.11} parent=0 // pred_check
    _
  $region23: #{bert_wrapper_forward.11} parent=0 // pred_check_branch
    %123 = sbr.rel (0) target = $region25
  $region24: #{bert_wrapper_forward.11} parent=0 // pred_region
    _
  $region25: #{bert_wrapper_forward.11} parent=0 // pred_fallthru
    _
  // Predicated region
  $region26: #{bert_wrapper_forward.11} parent=0 // pred_check
    _
  $region27: #{bert_wrapper_forward.11} parent=0 // pred_check_branch
    %125 = sbr.rel (0) target = $region29
  $region28: #{bert_wrapper_forward.11} parent=0 // pred_region
    _
  $region29: #{bert_wrapper_forward.11} parent=0 // pred_fallthru
    _

// kernel: bert_wrapper_forward.13
$region0: #{bert_wrapper_forward.13}
  #allocation0 [shape = 'u32[]', space=smem, size = 0x4, offset = 0x4, fixed_abs, tag = 'smem constant byte address 0x4 - core index']
  #allocation1 [shape = 'u32[144,128]{1,0:T(1,128)}', space=vmem, size = 0x12000, scoped, tag = 'internal scratch']
  #allocation2 [shape = 'f32[16,32]{1,0:T(8,128)}', space=vmem, size = 0x2000, scoped, tag = 'scratch operand']
  %s0 = inlined_call_operand.vmem [shape: bf16[16,32], index: 0, kind: input, shape index: {}]
  %s1 = inlined_call_operand.vmem [shape: bf16[32,32], index: 1, kind: input, shape index: {}]
  %s2 = inlined_call_operand.vmem [shape: f32[1,32], index: 2, kind: input, shape index: {}]
  %s3 = inlined_call_operand.vmem [shape: bf16[16,32], index: 3, kind: input, shape index: {}]
  %s4 = inlined_call_operand.vmem [shape: f32[1,32], index: 4, kind: input, shape index: {}]
  %s5 = inlined_call_operand.vmem [shape: f32[1,32], index: 5, kind: input, shape index: {}]
  %s6 = inlined_call_operand.vmem [shape: bf16[16,32], index: 6, kind: output, shape index: {}]
  %s7 = sld [smem:[#allocation0]]
  $region42: #{bert_wrapper_forward.13} parent=0
    _
  %s9 = ssub.s32 1, %s7
  %s10 = scalar_select 0, %s9, %s7
  // Predicated region
  $region2: #{bert_wrapper_forward.13} parent=0 // pred_check
    _
  $region3: #{bert_wrapper_forward.13} parent=0 // pred_check_branch
    %12 = sbr.rel (0) target = $region5
  $region4: #{bert_wrapper_forward.13} parent=0 // pred_region
    _
  $region5: #{bert_wrapper_forward.13} parent=0 // pred_fallthru
    _
  // Predicated region
  $region6: #{bert_wrapper_forward.13} parent=0 // pred_check
    _
  $region7: #{bert_wrapper_forward.13} parent=0 // pred_check_branch
    %14 = sbr.rel (0) target = $region9
  $region8: #{bert_wrapper_forward.13} parent=0 // pred_region
    _
  $region9: #{bert_wrapper_forward.13} parent=0 // pred_fallthru
    _
  // Predicated region
  $region10: #{bert_wrapper_forward.13} parent=0 // pred_check
    _
  $region11: #{bert_wrapper_forward.13} parent=0 // pred_check_branch
    %16 = sbr.rel (0) target = $region13
  $region12: #{bert_wrapper_forward.13} parent=0 // pred_region
    _
  $region13: #{bert_wrapper_forward.13} parent=0 // pred_fallthru
    _
  // Predicated region
  $region14: #{bert_wrapper_forward.13} parent=0 // pred_check
    _
  $region15: #{bert_wrapper_forward.13} parent=0 // pred_check_branch
    %18 = sbr.rel (0) target = $region17
  $region16: #{bert_wrapper_forward.13} parent=0 // pred_region
    _
  $region17: #{bert_wrapper_forward.13} parent=0 // pred_fallthru
    _
  // Predicated region
  $region18: #{bert_wrapper_forward.13} parent=0 // pred_check
    _
  $region19: #{bert_wrapper_forward.13} parent=0 // pred_check_branch
    %20 = sbr.rel (0) target = $region21
  $region20: #{bert_wrapper_forward.13} parent=0 // pred_region
    _
  $region21: #{bert_wrapper_forward.13} parent=0 // pred_fallthru
    _
  // Predicated region
  $region22: #{bert_wrapper_forward.13} parent=0 // pred_check
    _
  $region23: #{bert_wrapper_forward.13} parent=0 // pred_check_branch
    %22 = sbr.rel (0) target = $region25
  $region24: #{bert_wrapper_forward.13} parent=0 // pred_region
    _
  $region25: #{bert_wrapper_forward.13} parent=0 // pred_fallthru
    _
  %p24 = scmp.eq.s32.totalorder 0, 0
  // Predicated region
  $region26: #{bert_wrapper_forward.13} parent=0 // pred_check
    %p25 = pneg %p24
  $region27: #{bert_wrapper_forward.13} parent=0 // pred_check_branch
    %27 = sbr.rel (%p25) target = $region29
  $region28: #{bert_wrapper_forward.13} parent=0 // pred_region
    %vm28 = vcmask 261120
    %29 = vst.msk [vmem:[#allocation2] sm:$0xff] %vm28, 0.0
    %30 = vst.msk [vmem:[#allocation2 + $0x8] sm:$0xff] %vm28, 0.0
  $region29: #{bert_wrapper_forward.13} parent=0 // pred_fallthru
    _
  %v31 = vld [vmem:[#allocation2] sm:$0xff]
  %v32 = vld [vmem:[#allocation2 + $0x8] sm:$0xff]
  %v33 = vld [vmem:[%s0] sm:$0xf]
  %v34 = vld [vmem:[%s0 + $0x4] sm:$0xf]
  %v35 = vld [vmem:[%s1] sm:$0xf]
  %v36 = vld [vmem:[%s1 + $0x4] sm:$0xf]
  %v37 = vld [vmem:[%s1 + $0x8] sm:$0xf]
  %v38 = vld [vmem:[%s1 + $0xc] sm:$0xf]
  %v41 = vunpack.c.l.b16 %v33
  %v42 = vunpack.c.l.b16 %v34
  %v43 = vpack.c.b16 %v42, %v41
  %v48 = vunpack.c.l.b16 %v35
  %v49 = vunpack.c.l.b16 %v36
  %v50 = vunpack.c.l.b16 %v37
  %v51 = vunpack.c.l.b16 %v38
  %v52 = vpack.c.b16 %v49, %v48
  %v53 = vpack.c.b16 %v51, %v50
  %vm56 = vcmask 261120
  %v58 = vsel %vm56, %v43, 0
  %60 = vmatprep.subr.bf16.mxu0 0
  %61 = vmatpush1.bf16.msra.mxu0 0
  %62 = vmatprep.subr.bf16.mxu0 0
  %63 = vmatpush1.bf16.msra.mxu0 0
  %64 = vmatprep.subr.bf16.mxu0 0
  %65 = vmatpush1.bf16.msra.mxu0 0
  %66 = vmatprep.subr.bf16.mxu0 0
  %67 = vmatpush1.bf16.msra.mxu0 0
  %68 = vmatprep.subr.bf16.mxu0 0
  %69 = vmatpush1.bf16.msra.mxu0 0
  %70 = vmatprep.subr.bf16.mxu0 0
  %71 = vmatpush1.bf16.msra.mxu0 0
  %72 = vmatprep.subr.bf16.mxu0 0
  %73 = vmatpush1.bf16.msra.mxu0 %v53
  %74 = vmatprep.subr.bf16.mxu0 0
  %75 = vmatpush1.bf16.msra.mxu0 %v52
  %76 = vmatprep.subr.bf16.mxu0 0
  %77 = vmatpush2.bf16.msra.mxu0 0
  %78 = vmatprep.subr.bf16.mxu0 0
  %79 = vmatpush2.bf16.msra.mxu0 0
  %80 = vmatprep.subr.bf16.mxu0 0
  %81 = vmatpush2.bf16.msra.mxu0 0
  %82 = vmatprep.subr.bf16.mxu0 0
  %83 = vmatpush2.bf16.msra.mxu0 0
  %84 = vmatprep.subr.bf16.mxu0 0
  %85 = vmatpush2.bf16.msra.mxu0 0
  %86 = vmatprep.subr.bf16.mxu0 0
  %87 = vmatpush2.bf16.msra.mxu0 0
  %88 = vmatprep.subr.bf16.mxu0 0
  %89 = vmatpush2.bf16.msra.mxu0 0
  %90 = vmatprep.subr.bf16.mxu0 0
  %91 = vmatpush2.bf16.msra.mxu0 0
  %92 = vmatprep.mubr.bf16.mxu0 0
  %93 = vmatmul.mubr.bf16.gmra.mxu0 %v58
  %v94 = vpop.f32.mrf.mxu0
  %v95 = vadd.f32 0.0, %v94
  %v96 = vpop.f32.mrf.mxu0
  %v97 = vpop.f32.mrf.mxu0
  %v98 = vadd.f32 0.0, %v97
  %v99 = vpop.f32.mrf.mxu0
  %100 = vdwg.mxu0
  %v101 = vadd.f32 %v31, %v95
  %v102 = vadd.f32 %v32, %v98
  %103 = vst.msk [vmem:[#allocation2] sm:$0xff] %vm56, %v101
  %104 = vst.msk [vmem:[#allocation2 + $0x8] sm:$0xff] %vm56, %v102
  // Predicated region
  $region30: #{bert_wrapper_forward.13} parent=0 // pred_check
    %p105 = pneg %p24
  $region31: #{bert_wrapper_forward.13} parent=0 // pred_check_branch
    %107 = sbr.rel (%p105) target = $region33
  $region32: #{bert_wrapper_forward.13} parent=0 // pred_region
    %v108 = vld [vmem:[#allocation2] sm:$0xff]
    %v109 = vld [vmem:[#allocation2 + $0x8] sm:$0xff]
    %v110 = vld [vmem:[%s2] sm:$0x1]
    %v112 = vlaneseq
    %v113 = vshrl.u32 %v112, 7
    %v114 = vsub.s32 0, %v113
    %v115 = vrot.slane %v110, %v114
    %v117 = vadd.f32 %v108, %v115
    %v118 = vadd.f32 %v109, %v115
    %v119 = vld [vmem:[%s3] sm:$0xf]
    %v120 = vld [vmem:[%s3 + $0x4] sm:$0xf]
    %v121 = vunpack.c.l.bf16 %v119
    %v122 = vunpack.c.l.bf16 %v120
    %v123 = vadd.f32 %v117, %v121
    %v124 = vadd.f32 %v118, %v122
    %v125 = vsel %vm56, %v123, 0.0
    %126 = vadd.xlane.f32.xlu0 %v125
    %v127 = vpop.xlane.xlu0 %126
    %v128 = vsel %vm56, %v124, 0.0
    %129 = vadd.xlane.f32.xlu0 %v128
    %v130 = vpop.xlane.xlu0 %129
    %v131 = vrcp.pop 32.0
    %v132 = vmul.f32 %v127, %v131
    %v133 = vmul.f32 %v130, %v131
    %v134 = vsub.f32 %v123, %v132
    %v135 = vsub.f32 %v124, %v133
    %v136 = vmul.f32 %v134, %v134
    %v137 = vmul.f32 %v135, %v135
    %v138 = vsel %vm56, %v136, 0.0
    %139 = vadd.xlane.f32.xlu0 %v138
    %v140 = vpop.xlane.xlu0 %139
    %v141 = vsel %vm56, %v137, 0.0
    %142 = vadd.xlane.f32.xlu0 %v141
    %v143 = vpop.xlane.xlu0 %142
    %v144 = vmul.f32 %v140, %v131
    %v145 = vmul.f32 %v143, %v131
    %v146 = vadd.f32 %v144, 1e-12
    %v147 = vadd.f32 %v145, 1e-12
    %v148 = vrsqrt.pop %v146
    %v149 = vrsqrt.pop %v147
    %v150 = vmul.f32 %v134, %v148
    %v151 = vmul.f32 %v135, %v149
    %v152 = vld [vmem:[%s4] sm:$0x1]
    %v154 = vlaneseq
    %v155 = vshrl.u32 %v154, 7
    %v156 = vsub.s32 0, %v155
    %v157 = vrot.slane %v152, %v156
    %v159 = vmul.f32 %v150, %v157
    %v160 = vmul.f32 %v151, %v157
    %v161 = vld [vmem:[%s5] sm:$0x1]
    %v163 = vlaneseq
    %v164 = vshrl.u32 %v163, 7
    %v165 = vsub.s32 0, %v164
    %v166 = vrot.slane %v161, %v165
    %v168 = vadd.f32 %v159, %v166
    %v169 = vadd.f32 %v160, %v166
    %v170 = vpack.c.bf16 %v169, %v168
    %v172 = vunpack.c.l.b16 %v170
    %v173 = vunpack.c.h.b16 %v170
    %v174 = vpack.c.b16 %v172, %v172
    %v175 = vpack.c.b16 %v173, %v173
    %vm178 = vcmask 257024
    %179 = vst.msk [vmem:[%s6] sm:$0xf] %vm178, %v174
    %180 = vst.msk [vmem:[%s6 + $0x4] sm:$0xf] %vm178, %v175
  $region33: #{bert_wrapper_forward.13} parent=0 // pred_fallthru
    _
  // Predicated region
  $region34: #{bert_wrapper_forward.13} parent=0 // pred_check
    _
  $region35: #{bert_wrapper_forward.13} parent=0 // pred_check_branch
    %182 = sbr.rel (0) target = $region37
  $region36: #{bert_wrapper_forward.13} parent=0 // pred_region
    _
  $region37: #{bert_wrapper_forward.13} parent=0 // pred_fallthru
    _
  // Predicated region
  $region38: #{bert_wrapper_forward.13} parent=0 // pred_check
    _
  $region39: #{bert_wrapper_forward.13} parent=0 // pred_check_branch
    %184 = sbr.rel (0) target = $region41
  $region40: #{bert_wrapper_forward.13} parent=0 // pred_region
    _
  $region41: #{bert_wrapper_forward.13} parent=0 // pred_fallthru
    _

// kernel: bert_wrapper_forward.12
$region0: #{bert_wrapper_forward.12}
  #allocation0 [shape = 'u32[]', space=smem, size = 0x4, offset = 0x4, fixed_abs, tag = 'smem constant byte address 0x4 - core index']
  #allocation1 [shape = 'u32[144,128]{1,0:T(1,128)}', space=vmem, size = 0x12000, scoped, tag = 'internal scratch']
  %s0 = inlined_call_operand.vmem [shape: bf16[2,8,96], index: 0, kind: input, shape index: {}]
  %s1 = inlined_call_operand.vmem [shape: f32[2,1,8], index: 1, kind: input, shape index: {}]
  %s2 = inlined_call_operand.vmem [shape: bf16[2,8,32], index: 2, kind: output, shape index: {}]
  %s3 = sld [smem:[#allocation0]]
  $region41: #{bert_wrapper_forward.12} parent=0
    _
  %s5 = ssub.s32 1, %s3
  %s6 = scalar_select 0, %s5, %s3
  loop: start=0, step=1, limit=4
  $region2: #{bert_wrapper_forward.12} parent=0 // loop_pre_header
    _
  $region3: #{bert_wrapper_forward.12} parent=0 // loop_header
    %s8 = sphi 0, %s12
    %p9 = scmp.ge.s32.totalorder %s8, 4
    %s15 = sphi 0, %s27
    %s16 = sphi 0, %s23
    %s17 = sphi 0, %s15
    %s18 = sphi 0, %s16
    %s19 = sphi 0, %s17
    %s20 = sphi 0, %s18
    %s30 = sphi 0, %s32
    %s33 = sphi 0, %s30
    %s34 = sphi 0, %s33
    %s50 = sphi 0, %s34
    %s56 = sphi 0, %s58
    %s59 = sphi 0, %s56
    %s60 = sphi 0, %s59
    %s76 = sphi 0, %s60
    %s84 = sphi 0, %s86
    %s87 = sphi 0, %s84
    %s88 = sphi 0, %s87
    %s104 = sphi 0, %s88
  $region4: #{bert_wrapper_forward.12} parent=0 // loop_header_branch
    %11 = sbr.rel (%p9) target = $region8
  $region5: #{bert_wrapper_forward.12} parent=0 // loop_body
    %s13 = ssub.s32 %s8, 1
    %s14 = ssub.s32 %s8, 2
    %s21 = sadd.s32 1, %s16
    %p22 = scmp.ge.s32.totalorder %s21, 1
    %s23 = scalar_select %p22, 0, %s21
    %s24 = sadd.s32 1, %s15
    %s25 = scalar_select %p22, %s24, %s15
    %p26 = scmp.ge.s32.totalorder %s25, 2
    %s27 = scalar_select %p26, 0, %s25
    %s28 = ssub.s32 %s15, %s27
    %p29 = scmp.eq.s32.totalorder %s28, 0
    %s31 = sadd.s32 %s30, 1
    %s32 = scalar_select %p29, %s30, %s31
    %p35 = pneg %p29
    %p36 = scmp.eq.s32.totalorder %s8, 1
    %p37 = por %p35, %p36
    %p38 = scmp.ne.s32.totalorder %s30, %s33
    %p39 = scmp.eq.s32.totalorder %s8, 0
    %p40 = por %p38, %p39
    %p41 = scmp.ne.s32.totalorder %s30, %s33
    %p42 = scmp.eq.s32.totalorder %s13, 1
    %p43 = por %p41, %p42
    %p44 = scmp.ne.s32.totalorder %s33, %s34
    %p45 = scmp.eq.s32.totalorder %s13, 0
    %p46 = por %p44, %p45
    %p47 = scmp.ne.s32.totalorder %s33, %s34
    %p48 = scmp.eq.s32.totalorder %s14, 1
    %p49 = por %p47, %p48
    %p51 = scmp.ne.s32.totalorder %s34, %s50
    %p52 = scmp.eq.s32.totalorder %s14, 0
    %p53 = por %p51, %p52
    %s54 = ssub.s32 %s15, %s27
    %p55 = scmp.eq.s32.totalorder %s54, 0
    %s57 = sadd.s32 %s56, 1
    %s58 = scalar_select %p55, %s56, %s57
    %p61 = pneg %p55
    %p62 = scmp.eq.s32.totalorder %s8, 1
    %p63 = por %p61, %p62
    %p64 = scmp.ne.s32.totalorder %s56, %s59
    %p65 = scmp.eq.s32.totalorder %s8, 0
    %p66 = por %p64, %p65
    %p67 = scmp.ne.s32.totalorder %s56, %s59
    %p68 = scmp.eq.s32.totalorder %s13, 1
    %p69 = por %p67, %p68
    %p70 = scmp.ne.s32.totalorder %s59, %s60
    %p71 = scmp.eq.s32.totalorder %s13, 0
    %p72 = por %p70, %p71
    %p73 = scmp.ne.s32.totalorder %s59, %s60
    %p74 = scmp.eq.s32.totalorder %s14, 1
    %p75 = por %p73, %p74
    %p77 = scmp.ne.s32.totalorder %s60, %s76
    %p78 = scmp.eq.s32.totalorder %s14, 0
    %p79 = por %p77, %p78
    %s80 = ssub.s32 %s15, %s27
    %s81 = ssub.s32 %s16, %s23
    %s82 = sor.u32 %s80, %s81
    %p83 = scmp.eq.s32.totalorder %s82, 0
    %s85 = sadd.s32 %s84, 1
    %s86 = scalar_select %p83, %s84, %s85
    %p89 = pneg %p83
    %p90 = scmp.eq.s32.totalorder %s8, 1
    %p91 = por %p89, %p90
    %p92 = scmp.ne.s32.totalorder %s84, %s87
    %p93 = scmp.eq.s32.totalorder %s8, 0
    %p94 = por %p92, %p93
    %p95 = scmp.ne.s32.totalorder %s84, %s87
    %p96 = scmp.eq.s32.totalorder %s13, 1
    %p97 = por %p95, %p96
    %p98 = scmp.ne.s32.totalorder %s87, %s88
    %p99 = scmp.eq.s32.totalorder %s13, 0
    %p100 = por %p98, %p99
    %p101 = scmp.ne.s32.totalorder %s87, %s88
    %p102 = scmp.eq.s32.totalorder %s14, 1
    %p103 = por %p101, %p102
    %p105 = scmp.ne.s32.totalorder %s88, %s104
    %p106 = scmp.eq.s32.totalorder %s14, 0
    %p107 = por %p105, %p106
    %p108 = scmp.le.s32.totalorder 1, %s8
    %p109 = scmp.lt.s32.totalorder %s8, 3
    %p110 = pnand %p108, %p109
    %p111 = pneg %p110
    // Predicated region
    $region9: #{bert_wrapper_forward.12} parent=5 // pred_check
      _
    $region10: #{bert_wrapper_forward.12} parent=5 // pred_check_branch
      %113 = sbr.rel (%p110) target = $region12
    $region11: #{bert_wrapper_forward.12} parent=5 // pred_region
      %s114 = ssub.s32 %s8, 1
    $region12: #{bert_wrapper_forward.12} parent=5 // pred_fallthru
      _
    %p115 = scmp.lt.s32.totalorder %s8, 2
    // Predicated region
    $region13: #{bert_wrapper_forward.12} parent=5 // pred_check
      %p116 = pneg %p115
    $region14: #{bert_wrapper_forward.12} parent=5 // pred_check_branch
      %118 = sbr.rel (%p116) target = $region16
    $region15: #{bert_wrapper_forward.12} parent=5 // pred_region
      // Predicated region
      $region17: #{bert_wrapper_forward.12} parent=15 // pred_check
        %p119 = pneg %p40
      $region18: #{bert_wrapper_forward.12} parent=15 // pred_check_branch
        %121 = sbr.rel (%p119) target = $region20
      $region19: #{bert_wrapper_forward.12} parent=15 // pred_region
        %p122 = scmp.lt.s32.totalorder %s15, 1
        %s123 = scalar_select %p122, %s15, 1
        %s124 = smul.addr %s123, 4
        %s125 = scalar_lea.vmem %s0, %s124
      $region20: #{bert_wrapper_forward.12} parent=15 // pred_fallthru
        _
      // Predicated region
      $region21: #{bert_wrapper_forward.12} parent=15 // pred_check
        %p126 = pneg %p66
      $region22: #{bert_wrapper_forward.12} parent=15 // pred_check_branch
        %128 = sbr.rel (%p126) target = $region24
      $region23: #{bert_wrapper_forward.12} parent=15 // pred_region
        %p129 = scmp.lt.s32.totalorder %s15, 1
        %s130 = scalar_select %p129, %s15, 1
        %s131 = scalar_lea.vmem %s1, %s130
      $region24: #{bert_wrapper_forward.12} parent=15 // pred_fallthru
        _
    $region16: #{bert_wrapper_forward.12} parent=5 // pred_fallthru
      _
    %p132 = scmp.le.s32.totalorder 1, %s8
    %p133 = scmp.lt.s32.totalorder %s8, 3
    %p134 = pnand %p132, %p133
    %p135 = pneg %p134
    // Predicated region
    $region25: #{bert_wrapper_forward.12} parent=5 // pred_check
      _
    $region26: #{bert_wrapper_forward.12} parent=5 // pred_check_branch
      %137 = sbr.rel (%p134) target = $region28
    $region27: #{bert_wrapper_forward.12} parent=5 // pred_region
      %s138 = ssub.s32 %s8, 1
      %p139 = scmp.lt.s32.totalorder %s17, 1
      %s140 = scalar_select %p139, %s17, 1
      %s141 = smul.addr %s140, 4
      %s142 = scalar_lea.vmem %s0, %s141
      %p143 = pneg %p46
      %p144 = pneg %p43
      %p145 = scmp.lt.s32.totalorder %s17, 1
      %s146 = scalar_select %p145, %s17, 1
      %s147 = scalar_lea.vmem %s1, %s146
      %p148 = pneg %p72
      %p149 = pneg %p69
      %p150 = pneg %p100
      %p151 = pneg %p97
      %p152 = scmp.lt.s32.totalorder %s17, 1
      %s153 = scalar_select %p152, %s17, 1
      %p154 = scmp.lt.s32.totalorder %s18, 0
      %s155 = scalar_select %p154, %s18, 0
      %s156 = sadd.s32 %s155, %s153
      %s157 = smul.addr %s156, 4
      %s158 = scalar_lea.vmem %s2, %s157
      %p159 = scmp.lt.s32.totalorder %s17, 1
      %s160 = scalar_select %p159, %s17, 1
      %s161 = smul.addr %s160, 4
      %s162 = scalar_lea.vmem %s0, %s161
      %p163 = scmp.lt.s32.totalorder %s17, 1
      %s164 = scalar_select %p163, %s17, 1
      %s165 = scalar_lea.vmem %s1, %s164
      %p166 = scmp.lt.s32.totalorder %s17, 1
      %s167 = scalar_select %p166, %s17, 1
      %p168 = scmp.lt.s32.totalorder %s18, 0
      %s169 = scalar_select %p168, %s18, 0
      %s170 = sadd.s32 %s169, %s167
      %s171 = smul.addr %s170, 4
      %s172 = scalar_lea.vmem %s2, %s171
      %s174 = smul.u32 %s18, 8
      %v175 = vld [vmem:[%s165] sm:$0x1]
      %s176 = sshra.s32 %s174, 3
      %s177 = sand.u32 %s174, 7
      %s178 = smul.addr %s176, 4
      %s179 = scalar_lea.vmem %s162, %s178
      %v180 = vld [vmem:[%s179] sm:$0xf]
      %v181 = vld [vmem:[%s162] sm:$0xf]
      %v183 = vlaneseq
      %v184 = vshrl.u32 %v183, 7
      %v185 = vsub.s32 0, %v184
      %v186 = vrot.slane %v175, %v185
      %v189 = vunpack.c.l.b16 %v181
      %v190 = vpack.c.b16 %v189, %v189
      %191 = vrot.lane.b32.xlu0 %v190, 96
      %v192 = vpop.permute.xlu0 %191
      %vm193 = vcmask 64512
      %v195 = vsel %vm193, %v180, 0
      %v198 = vsel %vm193, %v192, 0
      %200 = vmatprep.subr.bf16.mxu0 0
      %201 = vmatpush1.bf16.xpose.msra.mxu0 0
      %202 = vmatprep.subr.bf16.mxu0 0
      %203 = vmatpush1.bf16.xpose.msra.mxu0 0
      %204 = vmatprep.subr.bf16.mxu0 0
      %205 = vmatpush1.bf16.xpose.msra.mxu0 0
      %206 = vmatprep.subr.bf16.mxu0 0
      %207 = vmatpush1.bf16.xpose.msra.mxu0 0
      %208 = vmatprep.subr.bf16.mxu0 0
      %209 = vmatpush1.bf16.xpose.msra.mxu0 0
      %210 = vmatprep.subr.bf16.mxu0 0
      %211 = vmatpush1.bf16.xpose.msra.mxu0 0
      %212 = vmatprep.subr.bf16.mxu0 0
      %213 = vmatpush1.bf16.xpose.msra.mxu0 0
      %214 = vmatprep.subr.bf16.mxu0 0
      %215 = vmatpush1.bf16.xpose.msra.mxu0 %v198
      %216 = vmatprep.subr.bf16.mxu0 0
      %217 = vmatpush2.bf16.xpose.msra.mxu0 0
      %218 = vmatprep.subr.bf16.mxu0 0
      %219 = vmatpush2.bf16.xpose.msra.mxu0 0
      %220 = vmatprep.subr.bf16.mxu0 0
      %221 = vmatpush2.bf16.xpose.msra.mxu0 0
      %222 = vmatprep.subr.bf16.mxu0 0
      %223 = vmatpush2.bf16.xpose.msra.mxu0 0
      %224 = vmatprep.subr.bf16.mxu0 0
      %225 = vmatpush2.bf16.xpose.msra.mxu0 0
      %226 = vmatprep.subr.bf16.mxu0 0
      %227 = vmatpush2.bf16.xpose.msra.mxu0 0
      %228 = vmatprep.subr.bf16.mxu0 0
      %229 = vmatpush2.bf16.xpose.msra.mxu0 0
      %230 = vmatprep.subr.bf16.mxu0 0
      %231 = vmatpush2.bf16.xpose.msra.mxu0 0
      %232 = vmatprep.mubr.bf16.mxu0 0
      %233 = vmatmul.mubr.bf16.gmra.mxu0 %v195
      %v234 = vpop.f32.mrf.mxu0
      %v235 = vadd.f32 %v186, %v234
      %v236 = vpop.f32.mrf.mxu0
      %v237 = vpop.f32.mrf.mxu0
      %v238 = vpop.f32.mrf.mxu0
      %239 = vdwg.mxu0
      %v240 = vsel %vm193, %v235, -inf
      %241 = vmax.xlane.f32.xlu0 %v240
      %v242 = vpop.xlane.xlu0 %241
      %v243 = vsub.f32 %v235, %v242
      %v244 = vpack.c.bf16 %v243, %v243
      %v246 = vmul.bf16 %v244, 1069105081
      %v247 = vpow.bf16.pop %v246
      %v248 = vunpack.c.l.bf16 %v247
      %v249 = vsel %vm193, %v248, 0.0
      %250 = vadd.xlane.f32.xlu0 %v249
      %v251 = vpop.xlane.xlu0 %250
      %252 = vrot.lane.b32.xlu0 %v190, 64
      %v253 = vpop.permute.xlu0 %252
      %v255 = vsel %vm193, %v247, 0
      %vm257 = vcmask 1043456
      %v259 = vsel %vm257, %v253, 0
      %261 = vmatprep.subr.bf16.mxu0 0
      %262 = vmatpush1.bf16.msra.mxu0 0
      %263 = vmatprep.subr.bf16.mxu0 0
      %264 = vmatpush1.bf16.msra.mxu0 0
      %265 = vmatprep.subr.bf16.mxu0 0
      %266 = vmatpush1.bf16.msra.mxu0 0
      %267 = vmatprep.subr.bf16.mxu0 0
      %268 = vmatpush1.bf16.msra.mxu0 0
      %269 = vmatprep.subr.bf16.mxu0 0
      %270 = vmatpush1.bf16.msra.mxu0 0
      %271 = vmatprep.subr.bf16.mxu0 0
      %272 = vmatpush1.bf16.msra.mxu0 0
      %273 = vmatprep.subr.bf16.mxu0 0
      %274 = vmatpush1.bf16.msra.mxu0 0
      %275 = vmatprep.subr.bf16.mxu0 0
      %276 = vmatpush1.bf16.msra.mxu0 %v259
      %277 = vmatprep.subr.bf16.mxu0 0
      %278 = vmatpush2.bf16.msra.mxu0 0
      %279 = vmatprep.subr.bf16.mxu0 0
      %280 = vmatpush2.bf16.msra.mxu0 0
      %281 = vmatprep.subr.bf16.mxu0 0
      %282 = vmatpush2.bf16.msra.mxu0 0
      %283 = vmatprep.subr.bf16.mxu0 0
      %284 = vmatpush2.bf16.msra.mxu0 0
      %285 = vmatprep.subr.bf16.mxu0 0
      %286 = vmatpush2.bf16.msra.mxu0 0
      %287 = vmatprep.subr.bf16.mxu0 0
      %288 = vmatpush2.bf16.msra.mxu0 0
      %289 = vmatprep.subr.bf16.mxu0 0
      %290 = vmatpush2.bf16.msra.mxu0 0
      %291 = vmatprep.subr.bf16.mxu0 0
      %292 = vmatpush2.bf16.msra.mxu0 0
      %293 = vmatprep.mubr.bf16.mxu0 0
      %294 = vmatmul.mubr.bf16.gmra.mxu0 %v255
      %v295 = vpop.f32.mrf.mxu0
      %v296 = vadd.f32 0.0, %v295
      %v297 = vpop.f32.mrf.mxu0
      %v298 = vpop.f32.mrf.mxu0
      %v299 = vpop.f32.mrf.mxu0
      %300 = vdwg.mxu0
      %v301 = vrcp.pop %v251
      %v302 = vmul.f32 %v296, %v301
      %v304 = vunpack.c.l.b16 %v180
      %v305 = vpack.c.b16 %v304, %v304
      %306 = vrot.lane.b32.xlu0 %v305, 120
      %v307 = vpop.permute.xlu0 %306
      %308 = vrot.lane.b32.xlu0 %v190, 88
      %v309 = vpop.permute.xlu0 %308
      %v311 = vsel %vm193, %v307, 0
      %v314 = vsel %vm193, %v309, 0
      %316 = vmatprep.subr.bf16.mxu0 0
      %317 = vmatpush1.bf16.xpose.msra.mxu0 0
      %318 = vmatprep.subr.bf16.mxu0 0
      %319 = vmatpush1.bf16.xpose.msra.mxu0 0
      %320 = vmatprep.subr.bf16.mxu0 0
      %321 = vmatpush1.bf16.xpose.msra.mxu0 0
      %322 = vmatprep.subr.bf16.mxu0 0
      %323 = vmatpush1.bf16.xpose.msra.mxu0 0
      %324 = vmatprep.subr.bf16.mxu0 0
      %325 = vmatpush1.bf16.xpose.msra.mxu0 0
      %326 = vmatprep.subr.bf16.mxu0 0
      %327 = vmatpush1.bf16.xpose.msra.mxu0 0
      %328 = vmatprep.subr.bf16.mxu0 0
      %329 = vmatpush1.bf16.xpose.msra.mxu0 0
      %330 = vmatprep.subr.bf16.mxu0 0
      %331 = vmatpush1.bf16.xpose.msra.mxu0 %v314
      %332 = vmatprep.subr.bf16.mxu0 0
      %333 = vmatpush2.bf16.xpose.msra.mxu0 0
      %334 = vmatprep.subr.bf16.mxu0 0
      %335 = vmatpush2.bf16.xpose.msra.mxu0 0
      %336 = vmatprep.subr.bf16.mxu0 0
      %337 = vmatpush2.bf16.xpose.msra.mxu0 0
      %338 = vmatprep.subr.bf16.mxu0 0
      %339 = vmatpush2.bf16.xpose.msra.mxu0 0
      %340 = vmatprep.subr.bf16.mxu0 0
      %341 = vmatpush2.bf16.xpose.msra.mxu0 0
      %342 = vmatprep.subr.bf16.mxu0 0
      %343 = vmatpush2.bf16.xpose.msra.mxu0 0
      %344 = vmatprep.subr.bf16.mxu0 0
      %345 = vmatpush2.bf16.xpose.msra.mxu0 0
      %346 = vmatprep.subr.bf16.mxu0 0
      %347 = vmatpush2.bf16.xpose.msra.mxu0 0
      %348 = vmatprep.mubr.bf16.mxu0 0
      %349 = vmatmul.mubr.bf16.gmra.mxu0 %v311
      %v350 = vpop.f32.mrf.mxu0
      %v351 = vadd.f32 %v186, %v350
      %v352 = vpop.f32.mrf.mxu0
      %v353 = vpop.f32.mrf.mxu0
      %v354 = vpop.f32.mrf.mxu0
      %355 = vdwg.mxu0
      %v356 = vsel %vm193, %v351, -inf
      %357 = vmax.xlane.f32.xlu0 %v356
      %v358 = vpop.xlane.xlu0 %357
      %v359 = vsub.f32 %v351, %v358
      %v360 = vpack.c.bf16 %v359, %v359
      %v362 = vmul.bf16 %v360, 1069105081
      %v363 = vpow.bf16.pop %v362
      %v364 = vunpack.c.l.bf16 %v363
      %v365 = vsel %vm193, %v364, 0.0
      %366 = vadd.xlane.f32.xlu0 %v365
      %v367 = vpop.xlane.xlu0 %366
      %368 = vrot.lane.b32.xlu0 %v190, 56
      %v369 = vpop.permute.xlu0 %368
      %v371 = vsel %vm193, %v363, 0
      %v374 = vsel %vm257, %v369, 0
      %376 = vmatprep.subr.bf16.mxu0 0
      %377 = vmatpush1.bf16.msra.mxu0 0
      %378 = vmatprep.subr.bf16.mxu0 0
      %379 = vmatpush1.bf16.msra.mxu0 0
      %380 = vmatprep.subr.bf16.mxu0 0
      %381 = vmatpush1.bf16.msra.mxu0 0
      %382 = vmatprep.subr.bf16.mxu0 0
      %383 = vmatpush1.bf16.msra.mxu0 0
      %384 = vmatprep.subr.bf16.mxu0 0
      %385 = vmatpush1.bf16.msra.mxu0 0
      %386 = vmatprep.subr.bf16.mxu0 0
      %387 = vmatpush1.bf16.msra.mxu0 0
      %388 = vmatprep.subr.bf16.mxu0 0
      %389 = vmatpush1.bf16.msra.mxu0 0
      %390 = vmatprep.subr.bf16.mxu0 0
      %391 = vmatpush1.bf16.msra.mxu0 %v374
      %392 = vmatprep.subr.bf16.mxu0 0
      %393 = vmatpush2.bf16.msra.mxu0 0
      %394 = vmatprep.subr.bf16.mxu0 0
      %395 = vmatpush2.bf16.msra.mxu0 0
      %396 = vmatprep.subr.bf16.mxu0 0
      %397 = vmatpush2.bf16.msra.mxu0 0
      %398 = vmatprep.subr.bf16.mxu0 0
      %399 = vmatpush2.bf16.msra.mxu0 0
      %400 = vmatprep.subr.bf16.mxu0 0
      %401 = vmatpush2.bf16.msra.mxu0 0
      %402 = vmatprep.subr.bf16.mxu0 0
      %403 = vmatpush2.bf16.msra.mxu0 0
      %404 = vmatprep.subr.bf16.mxu0 0
      %405 = vmatpush2.bf16.msra.mxu0 0
      %406 = vmatprep.subr.bf16.mxu0 0
      %407 = vmatpush2.bf16.msra.mxu0 0
      %408 = vmatprep.mubr.bf16.mxu0 0
      %409 = vmatmul.mubr.bf16.gmra.mxu0 %v371
      %v410 = vpop.f32.mrf.mxu0
      %v411 = vadd.f32 0.0, %v410
      %v412 = vpop.f32.mrf.mxu0
      %v413 = vpop.f32.mrf.mxu0
      %v414 = vpop.f32.mrf.mxu0
      %415 = vdwg.mxu0
      %v416 = vrcp.pop %v367
      %v417 = vmul.f32 %v411, %v416
      %418 = vrot.lane.b32.xlu0 %v305, 112
      %v419 = vpop.permute.xlu0 %418
      %420 = vrot.lane.b32.xlu0 %v190, 80
      %v421 = vpop.permute.xlu0 %420
      %v423 = vsel %vm193, %v419, 0
      %v426 = vsel %vm193, %v421, 0
      %428 = vmatprep.subr.bf16.mxu0 0
      %429 = vmatpush1.bf16.xpose.msra.mxu0 0
      %430 = vmatprep.subr.bf16.mxu0 0
      %431 = vmatpush1.bf16.xpose.msra.mxu0 0
      %432 = vmatprep.subr.bf16.mxu0 0
      %433 = vmatpush1.bf16.xpose.msra.mxu0 0
      %434 = vmatprep.subr.bf16.mxu0 0
      %435 = vmatpush1.bf16.xpose.msra.mxu0 0
      %436 = vmatprep.subr.bf16.mxu0 0
      %437 = vmatpush1.bf16.xpose.msra.mxu0 0
      %438 = vmatprep.subr.bf16.mxu0 0
      %439 = vmatpush1.bf16.xpose.msra.mxu0 0
      %440 = vmatprep.subr.bf16.mxu0 0
      %441 = vmatpush1.bf16.xpose.msra.mxu0 0
      %442 = vmatprep.subr.bf16.mxu0 0
      %443 = vmatpush1.bf16.xpose.msra.mxu0 %v426
      %444 = vmatprep.subr.bf16.mxu0 0
      %445 = vmatpush2.bf16.xpose.msra.mxu0 0
      %446 = vmatprep.subr.bf16.mxu0 0
      %447 = vmatpush2.bf16.xpose.msra.mxu0 0
      %448 = vmatprep.subr.bf16.mxu0 0
      %449 = vmatpush2.bf16.xpose.msra.mxu0 0
      %450 = vmatprep.subr.bf16.mxu0 0
      %451 = vmatpush2.bf16.xpose.msra.mxu0 0
      %452 = vmatprep.subr.bf16.mxu0 0
      %453 = vmatpush2.bf16.xpose.msra.mxu0 0
      %454 = vmatprep.subr.bf16.mxu0 0
      %455 = vmatpush2.bf16.xpose.msra.mxu0 0
      %456 = vmatprep.subr.bf16.mxu0 0
      %457 = vmatpush2.bf16.xpose.msra.mxu0 0
      %458 = vmatprep.subr.bf16.mxu0 0
      %459 = vmatpush2.bf16.xpose.msra.mxu0 0
      %460 = vmatprep.mubr.bf16.mxu0 0
      %461 = vmatmul.mubr.bf16.gmra.mxu0 %v423
      %v462 = vpop.f32.mrf.mxu0
      %v463 = vadd.f32 %v186, %v462
      %v464 = vpop.f32.mrf.mxu0
      %v465 = vpop.f32.mrf.mxu0
      %v466 = vpop.f32.mrf.mxu0
      %467 = vdwg.mxu0
      %v468 = vsel %vm193, %v463, -inf
      %469 = vmax.xlane.f32.xlu0 %v468
      %v470 = vpop.xlane.xlu0 %469
      %v471 = vsub.f32 %v463, %v470
      %v472 = vpack.c.bf16 %v471, %v471
      %v474 = vmul.bf16 %v472, 1069105081
      %v475 = vpow.bf16.pop %v474
      %v476 = vunpack.c.l.bf16 %v475
      %v477 = vsel %vm193, %v476, 0.0
      %478 = vadd.xlane.f32.xlu0 %v477
      %v479 = vpop.xlane.xlu0 %478
      %480 = vrot.lane.b32.xlu0 %v190, 48
      %v481 = vpop.permute.xlu0 %480
      %v483 = vsel %vm193, %v475, 0
      %v486 = vsel %vm257, %v481, 0
      %488 = vmatprep.subr.bf16.mxu0 0
      %489 = vmatpush1.bf16.msra.mxu0 0
      %490 = vmatprep.subr.bf16.mxu0 0
      %491 = vmatpush1.bf16.msra.mxu0 0
      %492 = vmatprep.subr.bf16.mxu0 0
      %493 = vmatpush1.bf16.msra.mxu0 0
      %494 = vmatprep.subr.bf16.mxu0 0
      %495 = vmatpush1.bf16.msra.mxu0 0
      %496 = vmatprep.subr.bf16.mxu0 0
      %497 = vmatpush1.bf16.msra.mxu0 0
      %498 = vmatprep.subr.bf16.mxu0 0
      %499 = vmatpush1.bf16.msra.mxu0 0
      %500 = vmatprep.subr.bf16.mxu0 0
      %501 = vmatpush1.bf16.msra.mxu0 0
      %502 = vmatprep.subr.bf16.mxu0 0
      %503 = vmatpush1.bf16.msra.mxu0 %v486
      %504 = vmatprep.subr.bf16.mxu0 0
      %505 = vmatpush2.bf16.msra.mxu0 0
      %506 = vmatprep.subr.bf16.mxu0 0
      %507 = vmatpush2.bf16.msra.mxu0 0
      %508 = vmatprep.subr.bf16.mxu0 0
      %509 = vmatpush2.bf16.msra.mxu0 0
      %510 = vmatprep.subr.bf16.mxu0 0
      %511 = vmatpush2.bf16.msra.mxu0 0
      %512 = vmatprep.subr.bf16.mxu0 0
      %513 = vmatpush2.bf16.msra.mxu0 0
      %514 = vmatprep.subr.bf16.mxu0 0
      %515 = vmatpush2.bf16.msra.mxu0 0
      %516 = vmatprep.subr.bf16.mxu0 0
      %517 = vmatpush2.bf16.msra.mxu0 0
      %518 = vmatprep.subr.bf16.mxu0 0
      %519 = vmatpush2.bf16.msra.mxu0 0
      %520 = vmatprep.mubr.bf16.mxu0 0
      %521 = vmatmul.mubr.bf16.gmra.mxu0 %v483
      %v522 = vpop.f32.mrf.mxu0
      %v523 = vadd.f32 0.0, %v522
      %v524 = vpop.f32.mrf.mxu0
      %v525 = vpop.f32.mrf.mxu0
      %v526 = vpop.f32.mrf.mxu0
      %527 = vdwg.mxu0
      %v528 = vrcp.pop %v479
      %v529 = vmul.f32 %v523, %v528
      %530 = vrot.lane.b32.xlu0 %v305, 104
      %v531 = vpop.permute.xlu0 %530
      %532 = vrot.lane.b32.xlu0 %v190, 72
      %v533 = vpop.permute.xlu0 %532
      %v535 = vsel %vm193, %v531, 0
      %v538 = vsel %vm193, %v533, 0
      %540 = vmatprep.subr.bf16.mxu0 0
      %541 = vmatpush1.bf16.xpose.msra.mxu0 0
      %542 = vmatprep.subr.bf16.mxu0 0
      %543 = vmatpush1.bf16.xpose.msra.mxu0 0
      %544 = vmatprep.subr.bf16.mxu0 0
      %545 = vmatpush1.bf16.xpose.msra.mxu0 0
      %546 = vmatprep.subr.bf16.mxu0 0
      %547 = vmatpush1.bf16.xpose.msra.mxu0 0
      %548 = vmatprep.subr.bf16.mxu0 0
      %549 = vmatpush1.bf16.xpose.msra.mxu0 0
      %550 = vmatprep.subr.bf16.mxu0 0
      %551 = vmatpush1.bf16.xpose.msra.mxu0 0
      %552 = vmatprep.subr.bf16.mxu0 0
      %553 = vmatpush1.bf16.xpose.msra.mxu0 0
      %554 = vmatprep.subr.bf16.mxu0 0
      %555 = vmatpush1.bf16.xpose.msra.mxu0 %v538
      %556 = vmatprep.subr.bf16.mxu0 0
      %557 = vmatpush2.bf16.xpose.msra.mxu0 0
      %558 = vmatprep.subr.bf16.mxu0 0
      %559 = vmatpush2.bf16.xpose.msra.mxu0 0
      %560 = vmatprep.subr.bf16.mxu0 0
      %561 = vmatpush2.bf16.xpose.msra.mxu0 0
      %562 = vmatprep.subr.bf16.mxu0 0
      %563 = vmatpush2.bf16.xpose.msra.mxu0 0
      %564 = vmatprep.subr.bf16.mxu0 0
      %565 = vmatpush2.bf16.xpose.msra.mxu0 0
      %566 = vmatprep.subr.bf16.mxu0 0
      %567 = vmatpush2.bf16.xpose.msra.mxu0 0
      %568 = vmatprep.subr.bf16.mxu0 0
      %569 = vmatpush2.bf16.xpose.msra.mxu0 0
      %570 = vmatprep.subr.bf16.mxu0 0
      %571 = vmatpush2.bf16.xpose.msra.mxu0 0
      %572 = vmatprep.mubr.bf16.mxu0 0
      %573 = vmatmul.mubr.bf16.gmra.mxu0 %v535
      %v574 = vpop.f32.mrf.mxu0
      %v575 = vadd.f32 %v186, %v574
      %v576 = vpop.f32.mrf.mxu0
      %v577 = vpop.f32.mrf.mxu0
      %v578 = vpop.f32.mrf.mxu0
      %579 = vdwg.mxu0
      %v580 = vsel %vm193, %v575, -inf
      %581 = vmax.xlane.f32.xlu0 %v580
      %v582 = vpop.xlane.xlu0 %581
      %v583 = vsub.f32 %v575, %v582
      %v584 = vpack.c.bf16 %v583, %v583
      %v586 = vmul.bf16 %v584, 1069105081
      %v587 = vpow.bf16.pop %v586
      %v588 = vunpack.c.l.bf16 %v587
      %v589 = vsel %vm193, %v588, 0.0
      %590 = vadd.xlane.f32.xlu0 %v589
      %v591 = vpop.xlane.xlu0 %590
      %592 = vrot.lane.b32.xlu0 %v190, 40
      %v593 = vpop.permute.xlu0 %592
      %v595 = vsel %vm193, %v587, 0
      %v598 = vsel %vm257, %v593, 0
      %600 = vmatprep.subr.bf16.mxu0 0
      %601 = vmatpush1.bf16.msra.mxu0 0
      %602 = vmatprep.subr.bf16.mxu0 0
      %603 = vmatpush1.bf16.msra.mxu0 0
      %604 = vmatprep.subr.bf16.mxu0 0
      %605 = vmatpush1.bf16.msra.mxu0 0
      %606 = vmatprep.subr.bf16.mxu0 0
      %607 = vmatpush1.bf16.msra.mxu0 0
      %608 = vmatprep.subr.bf16.mxu0 0
      %609 = vmatpush1.bf16.msra.mxu0 0
      %610 = vmatprep.subr.bf16.mxu0 0
      %611 = vmatpush1.bf16.msra.mxu0 0
      %612 = vmatprep.subr.bf16.mxu0 0
      %613 = vmatpush1.bf16.msra.mxu0 0
      %614 = vmatprep.subr.bf16.mxu0 0
      %615 = vmatpush1.bf16.msra.mxu0 %v598
      %616 = vmatprep.subr.bf16.mxu0 0
      %617 = vmatpush2.bf16.msra.mxu0 0
      %618 = vmatprep.subr.bf16.mxu0 0
      %619 = vmatpush2.bf16.msra.mxu0 0
      %620 = vmatprep.subr.bf16.mxu0 0
      %621 = vmatpush2.bf16.msra.mxu0 0
      %622 = vmatprep.subr.bf16.mxu0 0
      %623 = vmatpush2.bf16.msra.mxu0 0
      %624 = vmatprep.subr.bf16.mxu0 0
      %625 = vmatpush2.bf16.msra.mxu0 0
      %626 = vmatprep.subr.bf16.mxu0 0
      %627 = vmatpush2.bf16.msra.mxu0 0
      %628 = vmatprep.subr.bf16.mxu0 0
      %629 = vmatpush2.bf16.msra.mxu0 0
      %630 = vmatprep.subr.bf16.mxu0 0
      %631 = vmatpush2.bf16.msra.mxu0 0
      %632 = vmatprep.mubr.bf16.mxu0 0
      %633 = vmatmul.mubr.bf16.gmra.mxu0 %v595
      %v634 = vpop.f32.mrf.mxu0
      %v635 = vadd.f32 0.0, %v634
      %v636 = vpop.f32.mrf.mxu0
      %v637 = vpop.f32.mrf.mxu0
      %v638 = vpop.f32.mrf.mxu0
      %639 = vdwg.mxu0
      %v640 = vrcp.pop %v591
      %v641 = vmul.f32 %v635, %v640
      %643 = vrot.lane.b32.xlu0 %v417, 8
      %v644 = vpop.permute.xlu0 %643
      %647 = vrot.lane.b32.xlu0 %v529, 16
      %v648 = vpop.permute.xlu0 %647
      %651 = vrot.lane.b32.xlu0 %v641, 24
      %v652 = vpop.permute.xlu0 %651
      %v654 = vsel %vm193, %v302, %v644
      %vm655 = vcmask 130048
      %v656 = vsel %vm655, %v654, %v648
      %vm657 = vcmask 195584
      %v658 = vsel %vm657, %v656, %v652
      %v659 = vpack.c.bf16 %v658, %v658
      %vm660 = vcmask 257024
      %661 = vst.msk [vmem:[%s172] sm:$0xf] %vm660, %v659
      %p662 = scmp.lt.s32.totalorder %s17, 1
      %s663 = scalar_select %p662, %s17, 1
      %p664 = scmp.lt.s32.totalorder %s18, 0
      %s665 = scalar_select %p664, %s18, 0
      %s666 = sadd.s32 %s665, %s663
      %s667 = smul.addr %s666, 4
      %s668 = scalar_lea.vmem %s2, %s667
      // Predicated region
      $region29: #{bert_wrapper_forward.12} parent=27 // pred_check
        %p669 = pneg %p97
      $region30: #{bert_wrapper_forward.12} parent=27 // pred_check_branch
        %671 = sbr.rel (%p669) target = $region32
      $region31: #{bert_wrapper_forward.12} parent=27 // pred_region
        _
      $region32: #{bert_wrapper_forward.12} parent=27 // pred_fallthru
        _
    $region28: #{bert_wrapper_forward.12} parent=5 // pred_fallthru
      _
    %p672 = scmp.le.s32.totalorder 2, %s8
    // Predicated region
    $region33: #{bert_wrapper_forward.12} parent=5 // pred_check
      %p673 = pneg %p672
    $region34: #{bert_wrapper_forward.12} parent=5 // pred_check_branch
      %675 = sbr.rel (%p673) target = $region36
    $region35: #{bert_wrapper_forward.12} parent=5 // pred_region
      %s676 = ssub.s32 %s8, 2
      // Predicated region
      $region37: #{bert_wrapper_forward.12} parent=35 // pred_check
        %p677 = pneg %p103
      $region38: #{bert_wrapper_forward.12} parent=35 // pred_check_branch
        %679 = sbr.rel (%p677) target = $region40
      $region39: #{bert_wrapper_forward.12} parent=35 // pred_region
        %p680 = scmp.lt.s32.totalorder %s19, 1
        %s681 = scalar_select %p680, %s19, 1
        %p682 = scmp.lt.s32.totalorder %s20, 0
        %s683 = scalar_select %p682, %s20, 0
        %s684 = sadd.s32 %s683, %s681
        %s685 = smul.addr %s684, 4
        %s686 = scalar_lea.vmem %s2, %s685
      $region40: #{bert_wrapper_forward.12} parent=35 // pred_fallthru
        _
    $region36: #{bert_wrapper_forward.12} parent=5 // pred_fallthru
      _
  $region6: #{bert_wrapper_forward.12} parent=0 // loop_footer
    %s12 = sadd.s32 1, %s8
  $region7: #{bert_wrapper_forward.12} parent=0 // loop_footer_branch
    %7 = sbr.rel target = $region3
  $region8: #{bert_wrapper_forward.12} parent=0 // loop_exit
    _

// kernel: bert_wrapper_forward.21
$region0: #{bert_wrapper_forward.21}
  #allocation0 [shape = 'u32[]', space=smem, size = 0x4, offset = 0x4, fixed_abs, tag = 'smem constant byte address 0x4 - core index']
  #allocation1 [shape = 'u32[144,128]{1,0:T(1,128)}', space=vmem, size = 0x12000, scoped, tag = 'internal scratch']
  #allocation2 [shape = 'f32[1,1]{1,0:T(1,128)S(1)}', space=vmem, size = 0x200, scoped, tag = 'scoped memory for bert_wrapper_forward.21']
  %s0 = inlined_call_operand.vmem [shape: bf16[2,32], index: 0, kind: input, shape index: {}]
  %s1 = inlined_call_operand.vmem [shape: bf16[32,32], index: 1, kind: input, shape index: {}]
  %s2 = inlined_call_operand.vmem [shape: f32[1,32], index: 2, kind: input, shape index: {}]
  %s3 = inlined_call_operand.vmem [shape: bf16[32,1], index: 3, kind: input, shape index: {}]
  %s4 = inlined_call_operand.<no memory space> [shape: f32[1,1], index: 4, kind: input, shape index: {}]
  %s5 = inlined_call_operand.vmem [shape: f32[2,1], index: 5, kind: output, shape index: {}]
  %s6 = sld [smem:[#allocation0]]
  $region30: #{bert_wrapper_forward.21} parent=0
    _
  %s8 = ssub.s32 1, %s6
  %s9 = scalar_select 0, %s8, %s6
  %v10 = vstv %s4
  %11 = vst [vmem:[#allocation2] sm:$0x1] %v10
  // Predicated region
  $region2: #{bert_wrapper_forward.21} parent=0 // pred_check
    _
  $region3: #{bert_wrapper_forward.21} parent=0 // pred_check_branch
    %13 = sbr.rel (0) target = $region5
  $region4: #{bert_wrapper_forward.21} parent=0 // pred_region
    _
  $region5: #{bert_wrapper_forward.21} parent=0 // pred_fallthru
    _
  // Predicated region
  $region6: #{bert_wrapper_forward.21} parent=0 // pred_check
    _
  $region7: #{bert_wrapper_forward.21} parent=0 // pred_check_branch
    %15 = sbr.rel (0) target = $region9
  $region8: #{bert_wrapper_forward.21} parent=0 // pred_region
    _
  $region9: #{bert_wrapper_forward.21} parent=0 // pred_fallthru
    _
  // Predicated region
  $region10: #{bert_wrapper_forward.21} parent=0 // pred_check
    _
  $region11: #{bert_wrapper_forward.21} parent=0 // pred_check_branch
    %17 = sbr.rel (0) target = $region13
  $region12: #{bert_wrapper_forward.21} parent=0 // pred_region
    _
  $region13: #{bert_wrapper_forward.21} parent=0 // pred_fallthru
    _
  // Predicated region
  $region14: #{bert_wrapper_forward.21} parent=0 // pred_check
    _
  $region15: #{bert_wrapper_forward.21} parent=0 // pred_check_branch
    %19 = sbr.rel (0) target = $region17
  $region16: #{bert_wrapper_forward.21} parent=0 // pred_region
    _
  $region17: #{bert_wrapper_forward.21} parent=0 // pred_fallthru
    _
  // Predicated region
  $region18: #{bert_wrapper_forward.21} parent=0 // pred_check
    _
  $region19: #{bert_wrapper_forward.21} parent=0 // pred_check_branch
    %21 = sbr.rel (0) target = $region21
  $region20: #{bert_wrapper_forward.21} parent=0 // pred_region
    _
  $region21: #{bert_wrapper_forward.21} parent=0 // pred_fallthru
    _
  %v23 = vld [vmem:[%s0] sm:$0x1]
  %v24 = vld [vmem:[%s1] sm:$0xf]
  %v25 = vld [vmem:[%s1 + $0x4] sm:$0xf]
  %v26 = vld [vmem:[%s1 + $0x8] sm:$0xf]
  %v27 = vld [vmem:[%s1 + $0xc] sm:$0xf]
  %v28 = vld [vmem:[%s2] sm:$0x1]
  %v30 = vlaneseq
  %v31 = vshrl.u32 %v30, 7
  %v32 = vsub.s32 0, %v31
  %v33 = vrot.slane %v28, %v32
  %v39 = vunpack.c.l.b16 %v24
  %v40 = vunpack.c.l.b16 %v25
  %v41 = vunpack.c.l.b16 %v26
  %v42 = vunpack.c.l.b16 %v27
  %v43 = vpack.c.b16 %v40, %v39
  %v44 = vpack.c.b16 %v42, %v41
  %vm47 = vcmask 261120
  %v49 = vsel %vm47, %v23, 0
  %51 = vmatprep.subr.bf16.mxu0 0
  %52 = vmatpush1.bf16.msra.mxu0 0
  %53 = vmatprep.subr.bf16.mxu0 0
  %54 = vmatpush1.bf16.msra.mxu0 0
  %55 = vmatprep.subr.bf16.mxu0 0
  %56 = vmatpush1.bf16.msra.mxu0 0
  %57 = vmatprep.subr.bf16.mxu0 0
  %58 = vmatpush1.bf16.msra.mxu0 0
  %59 = vmatprep.subr.bf16.mxu0 0
  %60 = vmatpush1.bf16.msra.mxu0 0
  %61 = vmatprep.subr.bf16.mxu0 0
  %62 = vmatpush1.bf16.msra.mxu0 0
  %63 = vmatprep.subr.bf16.mxu0 0
  %64 = vmatpush1.bf16.msra.mxu0 %v44
  %65 = vmatprep.subr.bf16.mxu0 0
  %66 = vmatpush1.bf16.msra.mxu0 %v43
  %67 = vmatprep.subr.bf16.mxu0 0
  %68 = vmatpush2.bf16.msra.mxu0 0
  %69 = vmatprep.subr.bf16.mxu0 0
  %70 = vmatpush2.bf16.msra.mxu0 0
  %71 = vmatprep.subr.bf16.mxu0 0
  %72 = vmatpush2.bf16.msra.mxu0 0
  %73 = vmatprep.subr.bf16.mxu0 0
  %74 = vmatpush2.bf16.msra.mxu0 0
  %75 = vmatprep.subr.bf16.mxu0 0
  %76 = vmatpush2.bf16.msra.mxu0 0
  %77 = vmatprep.subr.bf16.mxu0 0
  %78 = vmatpush2.bf16.msra.mxu0 0
  %79 = vmatprep.subr.bf16.mxu0 0
  %80 = vmatpush2.bf16.msra.mxu0 0
  %81 = vmatprep.subr.bf16.mxu0 0
  %82 = vmatpush2.bf16.msra.mxu0 0
  %83 = vmatprep.mubr.bf16.mxu0 0
  %84 = vmatmul.mubr.bf16.gmra.mxu0 %v49
  %v85 = vpop.f32.mrf.mxu0
  %v86 = vadd.f32 %v33, %v85
  %v87 = vpop.f32.mrf.mxu0
  %v88 = vpop.f32.mrf.mxu0
  %v89 = vpop.f32.mrf.mxu0
  %90 = vdwg.mxu0
  %v91 = vtanh.pop %v86
  %v92 = vpack.c.bf16 %v91, %v91
  %v93 = vld [vmem:[%s3] sm:$0xf]
  %v94 = vld [vmem:[%s3 + $0x4] sm:$0xf]
  %v95 = vld [vmem:[%s3 + $0x8] sm:$0xf]
  %v96 = vld [vmem:[%s3 + $0xc] sm:$0xf]
  %v97 = vld [vmem:[#allocation2] sm:$0x1]
  %v99 = vlaneseq
  %v100 = vshrl.u32 %v99, 7
  %v101 = vsub.s32 0, %v100
  %v102 = vrot.slane %v97, %v101
  %v108 = vunpack.c.l.b16 %v93
  %v109 = vunpack.c.l.b16 %v94
  %v110 = vunpack.c.l.b16 %v95
  %v111 = vunpack.c.l.b16 %v96
  %v112 = vpack.c.b16 %v109, %v108
  %v113 = vpack.c.b16 %v111, %v110
  %v117 = vsel %vm47, %v92, 0
  %119 = vmatprep.subr.bf16.mxu0 0
  %120 = vmatpush1.bf16.msra.mxu0 0
  %121 = vmatprep.subr.bf16.mxu0 0
  %122 = vmatpush1.bf16.msra.mxu0 0
  %123 = vmatprep.subr.bf16.mxu0 0
  %124 = vmatpush1.bf16.msra.mxu0 0
  %125 = vmatprep.subr.bf16.mxu0 0
  %126 = vmatpush1.bf16.msra.mxu0 0
  %127 = vmatprep.subr.bf16.mxu0 0
  %128 = vmatpush1.bf16.msra.mxu0 0
  %129 = vmatprep.subr.bf16.mxu0 0
  %130 = vmatpush1.bf16.msra.mxu0 0
  %131 = vmatprep.subr.bf16.mxu0 0
  %132 = vmatpush1.bf16.msra.mxu0 %v113
  %133 = vmatprep.subr.bf16.mxu0 0
  %134 = vmatpush1.bf16.msra.mxu0 %v112
  %135 = vmatprep.subr.bf16.mxu0 0
  %136 = vmatpush2.bf16.msra.mxu0 0
  %137 = vmatprep.subr.bf16.mxu0 0
  %138 = vmatpush2.bf16.msra.mxu0 0
  %139 = vmatprep.subr.bf16.mxu0 0
  %140 = vmatpush2.bf16.msra.mxu0 0
  %141 = vmatprep.subr.bf16.mxu0 0
  %142 = vmatpush2.bf16.msra.mxu0 0
  %143 = vmatprep.subr.bf16.mxu0 0
  %144 = vmatpush2.bf16.msra.mxu0 0
  %145 = vmatprep.subr.bf16.mxu0 0
  %146 = vmatpush2.bf16.msra.mxu0 0
  %147 = vmatprep.subr.bf16.mxu0 0
  %148 = vmatpush2.bf16.msra.mxu0 0
  %149 = vmatprep.subr.bf16.mxu0 0
  %150 = vmatpush2.bf16.msra.mxu0 0
  %151 = vmatprep.mubr.bf16.mxu0 0
  %152 = vmatmul.mubr.bf16.gmra.mxu0 %v117
  %v153 = vpop.f32.mrf.mxu0
  %v154 = vadd.f32 %v102, %v153
  %v155 = vpop.f32.mrf.mxu0
  %v156 = vpop.f32.mrf.mxu0
  %v157 = vpop.f32.mrf.mxu0
  %158 = vdwg.mxu0
  %v159 = vsub.f32 0.0, %v154
  %v160 = vmul.f32 %v159, 1.442695
  %v161 = vpow.pop %v160
  %v162 = vadd.f32 %v161, 1.0
  %v163 = vrcp.pop %v162
  %v164 = vmul.f32 1.0, %v163
  %vm165 = vcmask 1024
  %166 = vst.msk [vmem:[%s5] sm:$0x3] %vm165, %v164
  // Predicated region
  $region22: #{bert_wrapper_forward.21} parent=0 // pred_check
    _
  $region23: #{bert_wrapper_forward.21} parent=0 // pred_check_branch
    %168 = sbr.rel (0) target = $region25
  $region24: #{bert_wrapper_forward.21} parent=0 // pred_region
    _
  $region25: #{bert_wrapper_forward.21} parent=0 // pred_fallthru
    _
  // Predicated region
  $region26: #{bert_wrapper_forward.21} parent=0 // pred_check
    _
  $region27: #{bert_wrapper_forward.21} parent=0 // pred_check_branch
    %170 = sbr.rel (0) target = $region29
  $region28: #{bert_wrapper_forward.21} parent=0 // pred_region
    _
  $region29: #{bert_wrapper_forward.21} parent=0 // pred_fallthru
    _

// kernel: bert_wrapper_forward.15
$region0: #{bert_wrapper_forward.15}
  #allocation0 [shape = 'u32[]', space=smem, size = 0x4, offset = 0x4, fixed_abs, tag = 'smem constant byte address 0x4 - core index']
  #allocation1 [shape = 'u32[144,128]{1,0:T(1,128)}', space=vmem, size = 0x12000, scoped, tag = 'internal scratch']
  #allocation2 [shape = 'f32[16,32]{1,0:T(8,128)}', space=vmem, size = 0x2000, scoped, tag = 'scratch operand']
  %s0 = inlined_call_operand.vmem [shape: bf16[16,64], index: 0, kind: input, shape index: {}]
  %s1 = inlined_call_operand.vmem [shape: bf16[64,32], index: 1, kind: input, shape index: {}]
  %s2 = inlined_call_operand.vmem [shape: f32[1,32], index: 2, kind: input, shape index: {}]
  %s3 = inlined_call_operand.vmem [shape: bf16[16,32], index: 3, kind: input, shape index: {}]
  %s4 = inlined_call_operand.vmem [shape: f32[1,32], index: 4, kind: input, shape index: {}]
  %s5 = inlined_call_operand.vmem [shape: f32[1,32], index: 5, kind: input, shape index: {}]
  %s6 = inlined_call_operand.vmem [shape: bf16[16,32], index: 6, kind: output, shape index: {}]
  %s7 = sld [smem:[#allocation0]]
  $region42: #{bert_wrapper_forward.15} parent=0
    _
  %s9 = ssub.s32 1, %s7
  %s10 = scalar_select 0, %s9, %s7
  // Predicated region
  $region2: #{bert_wrapper_forward.15} parent=0 // pred_check
    _
  $region3: #{bert_wrapper_forward.15} parent=0 // pred_check_branch
    %12 = sbr.rel (0) target = $region5
  $region4: #{bert_wrapper_forward.15} parent=0 // pred_region
    _
  $region5: #{bert_wrapper_forward.15} parent=0 // pred_fallthru
    _
  // Predicated region
  $region6: #{bert_wrapper_forward.15} parent=0 // pred_check
    _
  $region7: #{bert_wrapper_forward.15} parent=0 // pred_check_branch
    %14 = sbr.rel (0) target = $region9
  $region8: #{bert_wrapper_forward.15} parent=0 // pred_region
    _
  $region9: #{bert_wrapper_forward.15} parent=0 // pred_fallthru
    _
  // Predicated region
  $region10: #{bert_wrapper_forward.15} parent=0 // pred_check
    _
  $region11: #{bert_wrapper_forward.15} parent=0 // pred_check_branch
    %16 = sbr.rel (0) target = $region13
  $region12: #{bert_wrapper_forward.15} parent=0 // pred_region
    _
  $region13: #{bert_wrapper_forward.15} parent=0 // pred_fallthru
    _
  // Predicated region
  $region14: #{bert_wrapper_forward.15} parent=0 // pred_check
    _
  $region15: #{bert_wrapper_forward.15} parent=0 // pred_check_branch
    %18 = sbr.rel (0) target = $region17
  $region16: #{bert_wrapper_forward.15} parent=0 // pred_region
    _
  $region17: #{bert_wrapper_forward.15} parent=0 // pred_fallthru
    _
  // Predicated region
  $region18: #{bert_wrapper_forward.15} parent=0 // pred_check
    _
  $region19: #{bert_wrapper_forward.15} parent=0 // pred_check_branch
    %20 = sbr.rel (0) target = $region21
  $region20: #{bert_wrapper_forward.15} parent=0 // pred_region
    _
  $region21: #{bert_wrapper_forward.15} parent=0 // pred_fallthru
    _
  // Predicated region
  $region22: #{bert_wrapper_forward.15} parent=0 // pred_check
    _
  $region23: #{bert_wrapper_forward.15} parent=0 // pred_check_branch
    %22 = sbr.rel (0) target = $region25
  $region24: #{bert_wrapper_forward.15} parent=0 // pred_region
    _
  $region25: #{bert_wrapper_forward.15} parent=0 // pred_fallthru
    _
  %p24 = scmp.eq.s32.totalorder 0, 0
  // Predicated region
  $region26: #{bert_wrapper_forward.15} parent=0 // pred_check
    %p25 = pneg %p24
  $region27: #{bert_wrapper_forward.15} parent=0 // pred_check_branch
    %27 = sbr.rel (%p25) target = $region29
  $region28: #{bert_wrapper_forward.15} parent=0 // pred_region
    %vm28 = vcmask 261120
    %29 = vst.msk [vmem:[#allocation2] sm:$0xff] %vm28, 0.0
    %30 = vst.msk [vmem:[#allocation2 + $0x8] sm:$0xff] %vm28, 0.0
  $region29: #{bert_wrapper_forward.15} parent=0 // pred_fallthru
    _
  %v31 = vld [vmem:[#allocation2] sm:$0xff]
  %v32 = vld [vmem:[#allocation2 + $0x8] sm:$0xff]
  %v33 = vld [vmem:[%s0] sm:$0xf]
  %v34 = vld [vmem:[%s0 + $0x4] sm:$0xf]
  %v35 = vld [vmem:[%s1] sm:$0xf]
  %v36 = vld [vmem:[%s1 + $0x4] sm:$0xf]
  %v37 = vld [vmem:[%s1 + $0x8] sm:$0xf]
  %v38 = vld [vmem:[%s1 + $0xc] sm:$0xf]
  %v39 = vld [vmem:[%s1 + $0x10] sm:$0xf]
  %v40 = vld [vmem:[%s1 + $0x14] sm:$0xf]
  %v41 = vld [vmem:[%s1 + $0x18] sm:$0xf]
  %v42 = vld [vmem:[%s1 + $0x1c] sm:$0xf]
  %v45 = vunpack.c.l.b16 %v33
  %v46 = vunpack.c.l.b16 %v34
  %v47 = vpack.c.b16 %v46, %v45
  %v56 = vunpack.c.l.b16 %v35
  %v57 = vunpack.c.l.b16 %v36
  %v58 = vunpack.c.l.b16 %v37
  %v59 = vunpack.c.l.b16 %v38
  %v60 = vunpack.c.l.b16 %v39
  %v61 = vunpack.c.l.b16 %v40
  %v62 = vunpack.c.l.b16 %v41
  %v63 = vunpack.c.l.b16 %v42
  %v64 = vpack.c.b16 %v57, %v56
  %v65 = vpack.c.b16 %v59, %v58
  %v66 = vpack.c.b16 %v61, %v60
  %v67 = vpack.c.b16 %v63, %v62
  %vm72 = vcmask 523264
  %v74 = vsel %vm72, %v47, 0
  %76 = vmatprep.subr.bf16.mxu0 0
  %77 = vmatpush1.bf16.msra.mxu0 0
  %78 = vmatprep.subr.bf16.mxu0 0
  %79 = vmatpush1.bf16.msra.mxu0 0
  %80 = vmatprep.subr.bf16.mxu0 0
  %81 = vmatpush1.bf16.msra.mxu0 0
  %82 = vmatprep.subr.bf16.mxu0 0
  %83 = vmatpush1.bf16.msra.mxu0 0
  %84 = vmatprep.subr.bf16.mxu0 0
  %85 = vmatpush1.bf16.msra.mxu0 %v67
  %86 = vmatprep.subr.bf16.mxu0 0
  %87 = vmatpush1.bf16.msra.mxu0 %v66
  %88 = vmatprep.subr.bf16.mxu0 0
  %89 = vmatpush1.bf16.msra.mxu0 %v65
  %90 = vmatprep.subr.bf16.mxu0 0
  %91 = vmatpush1.bf16.msra.mxu0 %v64
  %92 = vmatprep.subr.bf16.mxu0 0
  %93 = vmatpush2.bf16.msra.mxu0 0
  %94 = vmatprep.subr.bf16.mxu0 0
  %95 = vmatpush2.bf16.msra.mxu0 0
  %96 = vmatprep.subr.bf16.mxu0 0
  %97 = vmatpush2.bf16.msra.mxu0 0
  %98 = vmatprep.subr.bf16.mxu0 0
  %99 = vmatpush2.bf16.msra.mxu0 0
  %100 = vmatprep.subr.bf16.mxu0 0
  %101 = vmatpush2.bf16.msra.mxu0 0
  %102 = vmatprep.subr.bf16.mxu0 0
  %103 = vmatpush2.bf16.msra.mxu0 0
  %104 = vmatprep.subr.bf16.mxu0 0
  %105 = vmatpush2.bf16.msra.mxu0 0
  %106 = vmatprep.subr.bf16.mxu0 0
  %107 = vmatpush2.bf16.msra.mxu0 0
  %108 = vmatprep.mubr.bf16.mxu0 0
  %109 = vmatmul.mubr.bf16.gmra.mxu0 %v74
  %v110 = vpop.f32.mrf.mxu0
  %v111 = vadd.f32 0.0, %v110
  %v112 = vpop.f32.mrf.mxu0
  %v113 = vpop.f32.mrf.mxu0
  %v114 = vadd.f32 0.0, %v113
  %v115 = vpop.f32.mrf.mxu0
  %116 = vdwg.mxu0
  %v117 = vadd.f32 %v31, %v111
  %v118 = vadd.f32 %v32, %v114
  %vm119 = vcmask 261120
  %120 = vst.msk [vmem:[#allocation2] sm:$0xff] %vm119, %v117
  %121 = vst.msk [vmem:[#allocation2 + $0x8] sm:$0xff] %vm119, %v118
  // Predicated region
  $region30: #{bert_wrapper_forward.15} parent=0 // pred_check
    %p122 = pneg %p24
  $region31: #{bert_wrapper_forward.15} parent=0 // pred_check_branch
    %124 = sbr.rel (%p122) target = $region33
  $region32: #{bert_wrapper_forward.15} parent=0 // pred_region
    %v125 = vld [vmem:[#allocation2] sm:$0xff]
    %v126 = vld [vmem:[#allocation2 + $0x8] sm:$0xff]
    %v127 = vld [vmem:[%s2] sm:$0x1]
    %v129 = vlaneseq
    %v130 = vshrl.u32 %v129, 7
    %v131 = vsub.s32 0, %v130
    %v132 = vrot.slane %v127, %v131
    %v134 = vadd.f32 %v125, %v132
    %v135 = vadd.f32 %v126, %v132
    %v136 = vld [vmem:[%s3] sm:$0xf]
    %v137 = vld [vmem:[%s3 + $0x4] sm:$0xf]
    %v138 = vunpack.c.l.bf16 %v136
    %v139 = vunpack.c.l.bf16 %v137
    %v140 = vadd.f32 %v134, %v138
    %v141 = vadd.f32 %v135, %v139
    %v142 = vsel %vm119, %v140, 0.0
    %143 = vadd.xlane.f32.xlu0 %v142
    %v144 = vpop.xlane.xlu0 %143
    %v145 = vsel %vm119, %v141, 0.0
    %146 = vadd.xlane.f32.xlu0 %v145
    %v147 = vpop.xlane.xlu0 %146
    %v148 = vrcp.pop 32.0
    %v149 = vmul.f32 %v144, %v148
    %v150 = vmul.f32 %v147, %v148
    %v151 = vsub.f32 %v140, %v149
    %v152 = vsub.f32 %v141, %v150
    %v153 = vmul.f32 %v151, %v151
    %v154 = vmul.f32 %v152, %v152
    %v155 = vsel %vm119, %v153, 0.0
    %156 = vadd.xlane.f32.xlu0 %v155
    %v157 = vpop.xlane.xlu0 %156
    %v158 = vsel %vm119, %v154, 0.0
    %159 = vadd.xlane.f32.xlu0 %v158
    %v160 = vpop.xlane.xlu0 %159
    %v161 = vmul.f32 %v157, %v148
    %v162 = vmul.f32 %v160, %v148
    %v163 = vadd.f32 %v161, 1e-12
    %v164 = vadd.f32 %v162, 1e-12
    %v165 = vrsqrt.pop %v163
    %v166 = vrsqrt.pop %v164
    %v167 = vmul.f32 %v151, %v165
    %v168 = vmul.f32 %v152, %v166
    %v169 = vld [vmem:[%s4] sm:$0x1]
    %v171 = vlaneseq
    %v172 = vshrl.u32 %v171, 7
    %v173 = vsub.s32 0, %v172
    %v174 = vrot.slane %v169, %v173
    %v176 = vmul.f32 %v167, %v174
    %v177 = vmul.f32 %v168, %v174
    %v178 = vld [vmem:[%s5] sm:$0x1]
    %v180 = vlaneseq
    %v181 = vshrl.u32 %v180, 7
    %v182 = vsub.s32 0, %v181
    %v183 = vrot.slane %v178, %v182
    %v185 = vadd.f32 %v176, %v183
    %v186 = vadd.f32 %v177, %v183
    %v187 = vpack.c.bf16 %v186, %v185
    %v189 = vunpack.c.l.b16 %v187
    %v190 = vunpack.c.h.b16 %v187
    %v191 = vpack.c.b16 %v189, %v189
    %v192 = vpack.c.b16 %v190, %v190
    %vm195 = vcmask 257024
    %196 = vst.msk [vmem:[%s6] sm:$0xf] %vm195, %v191
    %197 = vst.msk [vmem:[%s6 + $0x4] sm:$0xf] %vm195, %v192
  $region33: #{bert_wrapper_forward.15} parent=0 // pred_fallthru
    _
  // Predicated region
  $region34: #{bert_wrapper_forward.15} parent=0 // pred_check
    _
  $region35: #{bert_wrapper_forward.15} parent=0 // pred_check_branch
    %199 = sbr.rel (0) target = $region37
  $region36: #{bert_wrapper_forward.15} parent=0 // pred_region
    _
  $region37: #{bert_wrapper_forward.15} parent=0 // pred_fallthru
    _
  // Predicated region
  $region38: #{bert_wrapper_forward.15} parent=0 // pred_check
    _
  $region39: #{bert_wrapper_forward.15} parent=0 // pred_check_branch
    %201 = sbr.rel (0) target = $region41
  $region40: #{bert_wrapper_forward.15} parent=0 // pred_region
    _
  $region41: #{bert_wrapper_forward.15} parent=0 // pred_fallthru
    _

</llo_original>
